<compile_context>
chip_gen: v6e
topology: v6e:2x2x1
jax: 0.10.0
libtpu: 0.0.40
codegen_flags: <defaults>
</compile_context>

<pallas_src>
import functools

import jax
import jax.numpy as jnp
from jax import lax
from jax.experimental import pallas as pl
from jax.experimental.pallas import tpu as pltpu

BN_EPS = 1e-5

# MXU operand dtype. float32 keeps the correctness check tight; set to
# jnp.bfloat16 on v6e/v7x in production (~2-3x MXU throughput); accumulation
# stays float32 via preferred_element_type, BN2 stats stay float32.
MXU_DTYPE = jnp.float32


# ----------------------------- helpers (wrapper) -------------------------------

def _make_tap_masks(img_h, img_w):
    """(9, H*W) float32 validity mask per 3x3 tap on the flattened image.

    mask[t, m] == 1 iff output pixel m's source pixel for tap t=(kh,kw) lies
    inside the image (both row and column in range). This both implements the
    SAME-padding zeros and kills the wrap-around lanes produced by the roll.
    """
    hw = img_h * img_w
    pos = jnp.arange(hw, dtype=jnp.int32)
    row = pos // img_w
    col = pos % img_w
    masks = []
    for kh in range(3):
        for kw in range(3):
            ok = jnp.ones((hw,), jnp.bool_)
            if kh == 0:
                ok = ok & (row >= 1)
            elif kh == 2:
                ok = ok & (row <= img_h - 2)
            if kw == 0:
                ok = ok & (col >= 1)
            elif kw == 2:
                ok = ok & (col <= img_w - 2)
            masks.append(ok)
    return jnp.stack(masks, axis=0).astype(jnp.float32)


def _to_kernel_weight(w_hwio):
    """(3,3,Cin,Cout) HWIO -> (Cout, 9*Cin); slab row index = (3*kh+kw)*Cin + c."""
    kh, kw, cin, cout = w_hwio.shape
    return jnp.transpose(w_hwio, (3, 0, 1, 2)).reshape(cout, kh * kw * cin)


# ----------------------------- in-kernel helpers --------------------------------

def _fill_taps(slab_ref, x, masks, img_w, row_off):
    """Write the 9 lane-shifted, masked taps of x (C, HW) into slab rows
    [row_off, row_off + 9*C). Shift goes to the XLU via pltpu.roll; invalid
    (out-of-image / wrapped) lanes are zeroed by the precomputed masks."""
    c, hw = x.shape
    for kh in range(3):
        for kw in range(3):
            t = 3 * kh + kw
            delta = (kh - 1) * img_w + (kw - 1)      # source offset for tap t
            # want y[:, m] = x[:, m + delta]; roll(x, s)[m] = x[(m - s) % HW]
            shift = (-delta) % hw
            xt = pltpu.roll(x, shift=shift, axis=1) if shift else x
            tap = xt * masks[t:t + 1, :]
            slab_ref[pl.ds(row_off + t * c, c), :] = tap.astype(slab_ref.dtype)


# -------------------------------- kernels ----------------------------------------

def _res_part1_kernel(x_ref, s1_ref, t1_ref, w1_ref, b1_ref, m_ref,
                      c1_ref, stat_ref, slab_ref, *, img_w):
    """Per image: c1 = conv3x3(relu(bn1(x))) as ONE MXU matmul over the im2col
    slab; also emits per-image per-channel [sum(c1), sum(c1^2)] so BN2's batch
    statistics need no extra HBM pass over c1."""
    masks = m_ref[...]                                            # (9, HW)
    h1 = jnp.maximum(x_ref[...] * s1_ref[...] + t1_ref[...], 0.0)  # (Cin, HW)
    _fill_taps(slab_ref, h1, masks, img_w, 0)                      # (9*Cin, HW)
    c1 = jnp.dot(w1_ref[...].astype(MXU_DTYPE), slab_ref[...],
                 preferred_element_type=jnp.float32) + b1_ref[...]
    c1_ref[...] = c1.astype(c1_ref.dtype)
    stat_ref[...] = jnp.concatenate(
        [jnp.sum(c1, axis=1, keepdims=True),
         jnp.sum(c1 * c1, axis=1, keepdims=True)], axis=1)         # (D, 2)


def _res_part2_kernel(c1_ref, x_ref, s2_ref, t2_ref, wc_ref, bc_ref, m_ref,
                      o_ref, slab_ref, *, img_w):
    """Per image: out = conv3x3(relu(bn2(c1))) + conv3x3(x) fused into a SINGLE
    matmul: [W2 | Wi] (D, 9*D+9*Cin) @ [slab(h2); slab(x)] with bias b2+bi."""
    masks = m_ref[...]
    d = c1_ref.shape[0]
    h2 = jnp.maximum(c1_ref[...] * s2_ref[...] + t2_ref[...], 0.0)  # (D, HW)
    _fill_taps(slab_ref, h2, masks, img_w, 0)                       # rows [0, 9D)
    _fill_taps(slab_ref, x_ref[...], masks, img_w, 9 * d)           # rows [9D, 9D+9Cin)
    out = jnp.dot(wc_ref[...].astype(MXU_DTYPE), slab_ref[...],
                  preferred_element_type=jnp.float32) + bc_ref[...]
    o_ref[...] = out.astype(o_ref.dtype)


# ------------------------------- pallas_call wrappers -----------------------------

def _res_part1(x3, s1, t1, w1_2d, b1, masks, *, img_w):
    n, cin, hw = x3.shape
    d = w1_2d.shape[0]
    flops = int(n * 2 * (9 * cin) * d * hw)
    bytes_accessed = int(4 * (n * cin * hw + n * d * hw + n * d * 2
                              + d * 9 * cin + d + 2 * cin + 9 * hw))
    return pl.pallas_call(
        functools.partial(_res_part1_kernel, img_w=img_w),
        out_shape=(
            jax.ShapeDtypeStruct((n, d, hw), jnp.float32),   # c1
            jax.ShapeDtypeStruct((n, d, 2), jnp.float32),    # [sum, sumsq] of c1
        ),
        grid=(n,),
        in_specs=[
            pl.BlockSpec((None, cin, hw), lambda i: (i, 0, 0)),
            pl.BlockSpec((cin, 1), lambda i: (0, 0)),
            pl.BlockSpec((cin, 1), lambda i: (0, 0)),
            pl.BlockSpec((d, 9 * cin), lambda i: (0, 0)),
            pl.BlockSpec((d, 1), lambda i: (0, 0)),
            pl.BlockSpec((9, hw), lambda i: (0, 0)),
        ],
        out_specs=(
            pl.BlockSpec((None, d, hw), lambda i: (i, 0, 0)),
            pl.BlockSpec((None, d, 2), lambda i: (i, 0, 0)),
        ),
        scratch_shapes=[pltpu.VMEM((9 * cin, hw), MXU_DTYPE)],
        compiler_params=pltpu.CompilerParams(
            dimension_semantics=("parallel",)),
        cost_estimate=pl.CostEstimate(flops=flops, transcendentals=0,
                                      bytes_accessed=bytes_accessed),
    )(x3, s1, t1, w1_2d, b1, masks)


def _res_part2(c1, x3, s2, t2, w_cat, b_cat, masks, *, img_w):
    n, d, hw = c1.shape
    cin = x3.shape[1]
    k = 9 * d + 9 * cin
    flops = int(n * 2 * k * d * hw)
    bytes_accessed = int(4 * (n * d * hw + n * cin * hw + n * d * hw
                              + d * k + d + 2 * d + 9 * hw))
    return pl.pallas_call(
        functools.partial(_res_part2_kernel, img_w=img_w),
        out_shape=jax.ShapeDtypeStruct((n, d, hw), jnp.float32),
        grid=(n,),
        in_specs=[
            pl.BlockSpec((None, d, hw), lambda i: (i, 0, 0)),
            pl.BlockSpec((None, cin, hw), lambda i: (i, 0, 0)),
            pl.BlockSpec((d, 1), lambda i: (0, 0)),
            pl.BlockSpec((d, 1), lambda i: (0, 0)),
            pl.BlockSpec((d, k), lambda i: (0, 0)),
            pl.BlockSpec((d, 1), lambda i: (0, 0)),
            pl.BlockSpec((9, hw), lambda i: (0, 0)),
        ],
        out_specs=pl.BlockSpec((None, d, hw), lambda i: (i, 0, 0)),
        scratch_shapes=[pltpu.VMEM((k, hw), MXU_DTYPE)],
        compiler_params=pltpu.CompilerParams(
            dimension_semantics=("parallel",)),
        cost_estimate=pl.CostEstimate(flops=flops, transcendentals=0,
                                      bytes_accessed=bytes_accessed),
    )(c1, x3, s2, t2, w_cat, b_cat, masks)


# ------------------------------ forward (glue) -------------------------------------

def residual_block_forward(x_nchw, params, eps=BN_EPS):
    n, cin, h, w = x_nchw.shape
    hw = h * w
    x3 = x_nchw.reshape(n, cin, hw)        # lane dim = H*W (lane-dense)

    masks = _make_tap_masks(h, w)          # (9, HW), shared by both kernels

    # --- BN1 batch statistics (training mode) over (N, H, W) per channel ----
    mean1 = jnp.mean(x3, axis=(0, 2))
    var1 = jnp.var(x3, axis=(0, 2))        # biased, like nn.BatchNorm2d train fwd
    s1 = params["bn1_gamma"] / jnp.sqrt(var1 + eps)
    t1 = params["bn1_beta"] - mean1 * s1

    w1 = _to_kernel_weight(params["w1_hwio"])          # (D, 9*Cin)
    w2 = _to_kernel_weight(params["w2_hwio"])          # (D, 9*D)
    wi = _to_kernel_weight(params["wi_hwio"])          # (D, 9*Cin)
    w_cat = jnp.concatenate([w2, wi], axis=1)          # (D, 9*D + 9*Cin)
    b_cat = params["b2"] + params["bi"]                # residual add folded in

    c1, stats = _res_part1(x3, s1[:, None], t1[:, None], w1,
                           params["b1"][:, None], masks, img_w=w)

    # --- BN2 batch statistics from the fused per-image partial sums ---------
    # NOTE: single-pass var = E[x^2]-E[x]^2 in f32 (clamped); switch to a
    # mean-shifted sumsq if activations get large at production scale.
    cnt = n * hw
    tot = jnp.sum(stats[:, :, 0], axis=0)              # (D,)
    tot2 = jnp.sum(stats[:, :, 1], axis=0)             # (D,)
    mean2 = tot / cnt
    var2 = jnp.maximum(tot2 / cnt - mean2 * mean2, 0.0)
    s2 = params["bn2_gamma"] / jnp.sqrt(var2 + eps)
    t2 = params["bn2_beta"] - mean2 * s2

    out3 = _res_part2(c1, x3, s2[:, None], t2[:, None], w_cat,
                      b_cat[:, None], masks, img_w=w)
    return out3.reshape(n, -1, h, w)                    # NCHW, like PyTorch


# ------------------------------ params / reference ----------------------------------

def init_params(key, in_ch, out_dim):
    ks = jax.random.split(key, 10)

    def conv_w(k, cin, cout):
        fan_in = 9 * cin
        return jax.random.normal(k, (3, 3, cin, cout), jnp.float32) / jnp.sqrt(fan_in)

    return {
        "bn1_gamma": 1.0 + 0.1 * jax.random.normal(ks[0], (in_ch,), jnp.float32),
        "bn1_beta": 0.1 * jax.random.normal(ks[1], (in_ch,), jnp.float32),
        "w1_hwio": conv_w(ks[2], in_ch, out_dim),
        "b1": 0.1 * jax.random.normal(ks[3], (out_dim,), jnp.float32),
        "bn2_gamma": 1.0 + 0.1 * jax.random.normal(ks[4], (out_dim,), jnp.float32),
        "bn2_beta": 0.1 * jax.random.normal(ks[5], (out_dim,), jnp.float32),
        "w2_hwio": conv_w(ks[6], out_dim, out_dim),
        "b2": 0.1 * jax.random.normal(ks[7], (out_dim,), jnp.float32),
        "wi_hwio": conv_w(ks[8], in_ch, out_dim),
        "bi": 0.1 * jax.random.normal(ks[9], (out_dim,), jnp.float32),
    }


def _ref_conv_nchw(x, w_hwio, b):
    y = lax.conv_general_dilated(
        x, w_hwio, window_strides=(1, 1), padding="SAME",
        dimension_numbers=("NCHW", "HWIO", "NCHW"))
    return y + b[None, :, None, None]


def ref_forward(x, p, eps=BN_EPS):
    def bn_relu(v, g, b):
        m = jnp.mean(v, axis=(0, 2, 3), keepdims=True)
        s = jnp.var(v, axis=(0, 2, 3), keepdims=True)
        y = (v - m) / jnp.sqrt(s + eps) * g[None, :, None, None] + b[None, :, None, None]
        return jnp.maximum(y, 0.0)

    h = bn_relu(x, p["bn1_gamma"], p["bn1_beta"])
    h = _ref_conv_nchw(h, p["w1_hwio"], p["b1"])
    h = bn_relu(h, p["bn2_gamma"], p["bn2_beta"])
    h = _ref_conv_nchw(h, p["w2_hwio"], p["b2"])
    idt = _ref_conv_nchw(x, p["wi_hwio"], p["bi"])
    return h + idt


# ----------------------------------- main --------------------------------------------

if __name__ == "__main__":
    key = jax.random.PRNGKey(0)
    k_x, k_p = jax.random.split(key)

    N, Cin, H, W = 2, 4, 16, 16      # PyTorch NCHW input layout
    out_dim = 8

    x = jax.random.normal(k_x, (N, Cin, H, W), jnp.float32)
    params = init_params(k_p, Cin, out_dim)

    fwd = jax.jit(residual_block_forward)
    out = fwd(x, params)
    jax.block_until_ready(out)

    ref = ref_forward(x, params)
    assert out.shape == (N, out_dim, H, W), out.shape
    max_err = float(jnp.max(jnp.abs(out - ref)))
    # Tolerance accounts for MXU default-precision matmuls and differing
    # accumulation order vs. XLA's reference convolution.
    assert jnp.allclose(out, ref, rtol=1e-3, atol=1e-3), f"max abs err {max_err}"

    print("KERNEL_OK")
</pallas_src>

<mosaic_0001>
module attributes {stable_mosaic.version = 11 : i64} {
  func.func @_res_part1_kernel(%arg0: i32, %arg1: memref<1x4x256xf32, #tpu.memory_space<vmem>>, %arg2: memref<4x1xf32, #tpu.memory_space<vmem>>, %arg3: memref<4x1xf32, #tpu.memory_space<vmem>>, %arg4: memref<8x36xf32, #tpu.memory_space<vmem>>, %arg5: memref<8x1xf32, #tpu.memory_space<vmem>>, %arg6: memref<9x256xf32, #tpu.memory_space<vmem>>, %arg7: memref<1x8x256xf32, #tpu.memory_space<vmem>>, %arg8: memref<1x8x2xf32, #tpu.memory_space<vmem>>, %arg9: memref<36x256xf32, #tpu.memory_space<vmem>>) attributes {dimension_semantics = [#tpu.dimension_semantics<parallel>], iteration_bounds = array<i64: 2>, scalar_prefetch = 0 : i64, scratch_operands = 1 : i64, tpu.core_type = #tpu.core_type<tc>, window_params = [{transform_indices = @transform_0, window_bounds = array<i64: 1, 4, 256>}, {pipeline_mode = #tpu.pipeline_mode<synchronous>, transform_indices = @transform_1, window_bounds = array<i64: 4, 1>}, {pipeline_mode = #tpu.pipeline_mode<synchronous>, transform_indices = @transform_2, window_bounds = array<i64: 4, 1>}, {pipeline_mode = #tpu.pipeline_mode<synchronous>, transform_indices = @transform_3, window_bounds = array<i64: 8, 36>}, {pipeline_mode = #tpu.pipeline_mode<synchronous>, transform_indices = @transform_4, window_bounds = array<i64: 8, 1>}, {pipeline_mode = #tpu.pipeline_mode<synchronous>, transform_indices = @transform_5, window_bounds = array<i64: 9, 256>}, {transform_indices = @transform_6, window_bounds = array<i64: 1, 8, 256>}, {transform_indices = @transform_7, window_bounds = array<i64: 1, 8, 2>}]} {
    %c0 = arith.constant 0 : index
    %c0_0 = arith.constant 0 : index
    %0 = vector.load %arg6[%c0, %c0_0] : memref<9x256xf32, #tpu.memory_space<vmem>>, vector<9x256xf32>
    %c0_1 = arith.constant 0 : index
    %c0_2 = arith.constant 0 : index
    %c0_3 = arith.constant 0 : index
    %1 = vector.load %arg1[%c0_1, %c0_2, %c0_3] : memref<1x4x256xf32, #tpu.memory_space<vmem>>, vector<1x4x256xf32>
    %2 = vector.shape_cast %1 : vector<1x4x256xf32> to vector<4x256xf32>
    %c0_4 = arith.constant 0 : index
    %c0_5 = arith.constant 0 : index
    %3 = vector.load %arg2[%c0_4, %c0_5] : memref<4x1xf32, #tpu.memory_space<vmem>>, vector<4x1xf32>
    %4 = vector.broadcast %3 : vector<4x1xf32> to vector<4x256xf32>
    %5 = arith.mulf %2, %4 : vector<4x256xf32>
    %c0_6 = arith.constant 0 : index
    %c0_7 = arith.constant 0 : index
    %6 = vector.load %arg3[%c0_6, %c0_7] : memref<4x1xf32, #tpu.memory_space<vmem>>, vector<4x1xf32>
    %7 = vector.broadcast %6 : vector<4x1xf32> to vector<4x256xf32>
    %8 = arith.addf %5, %7 : vector<4x256xf32>
    %cst = arith.constant 0.000000e+00 : f32
    %9 = vector.broadcast %cst : f32 to vector<4x256xf32>
    %10 = arith.maximumf %8, %9 : vector<4x256xf32>
    %c17_i32 = arith.constant 17 : i32
    %11 = tpu.dynamic_rotate %10 by %c17_i32 dim 1 : vector<4x256xf32>, i32 -> vector<4x256xf32>
    %12 = vector.extract_strided_slice %0 {offsets = [0, 0], sizes = [1, 256], strides = [1, 1]} : vector<9x256xf32> to vector<1x256xf32>
    %13 = vector.broadcast %12 : vector<1x256xf32> to vector<4x256xf32>
    %14 = arith.mulf %11, %13 : vector<4x256xf32>
    %c0_8 = arith.constant 0 : index
    %c0_9 = arith.constant 0 : index
    %15 = vector.load %arg9[%c0_8, %c0_9] : memref<36x256xf32, #tpu.memory_space<vmem>>, vector<4x256xf32>
    tpu.vector_store %arg9[%c0_8, %c0_9], %14 {strides = array<i32>} : memref<36x256xf32, #tpu.memory_space<vmem>>, vector<4x256xf32>,
    %c16_i32 = arith.constant 16 : i32
    %16 = tpu.dynamic_rotate %10 by %c16_i32 dim 1 : vector<4x256xf32>, i32 -> vector<4x256xf32>
    %17 = vector.extract_strided_slice %0 {offsets = [1, 0], sizes = [1, 256], strides = [1, 1]} : vector<9x256xf32> to vector<1x256xf32>
    %18 = vector.broadcast %17 : vector<1x256xf32> to vector<4x256xf32>
    %19 = arith.mulf %16, %18 : vector<4x256xf32>
    %c4 = arith.constant 4 : index
    %c0_10 = arith.constant 0 : index
    %20 = vector.load %arg9[%c4, %c0_10] : memref<36x256xf32, #tpu.memory_space<vmem>>, vector<4x256xf32>
    tpu.vector_store %arg9[%c4, %c0_10], %19 {strides = array<i32>} : memref<36x256xf32, #tpu.memory_space<vmem>>, vector<4x256xf32>,
    %c15_i32 = arith.constant 15 : i32
    %21 = tpu.dynamic_rotate %10 by %c15_i32 dim 1 : vector<4x256xf32>, i32 -> vector<4x256xf32>
    %22 = vector.extract_strided_slice %0 {offsets = [2, 0], sizes = [1, 256], strides = [1, 1]} : vector<9x256xf32> to vector<1x256xf32>
    %23 = vector.broadcast %22 : vector<1x256xf32> to vector<4x256xf32>
    %24 = arith.mulf %21, %23 : vector<4x256xf32>
    %c8 = arith.constant 8 : index
    %c0_11 = arith.constant 0 : index
    %25 = vector.load %arg9[%c8, %c0_11] : memref<36x256xf32, #tpu.memory_space<vmem>>, vector<4x256xf32>
    tpu.vector_store %arg9[%c8, %c0_11], %24 {strides = array<i32>} : memref<36x256xf32, #tpu.memory_space<vmem>>, vector<4x256xf32>,
    %c1_i32 = arith.constant 1 : i32
    %26 = tpu.dynamic_rotate %10 by %c1_i32 dim 1 : vector<4x256xf32>, i32 -> vector<4x256xf32>
    %27 = vector.extract_strided_slice %0 {offsets = [3, 0], sizes = [1, 256], strides = [1, 1]} : vector<9x256xf32> to vector<1x256xf32>
    %28 = vector.broadcast %27 : vector<1x256xf32> to vector<4x256xf32>
    %29 = arith.mulf %26, %28 : vector<4x256xf32>
    %c12 = arith.constant 12 : index
    %c0_12 = arith.constant 0 : index
    %30 = vector.load %arg9[%c12, %c0_12] : memref<36x256xf32, #tpu.memory_space<vmem>>, vector<4x256xf32>
    tpu.vector_store %arg9[%c12, %c0_12], %29 {strides = array<i32>} : memref<36x256xf32, #tpu.memory_space<vmem>>, vector<4x256xf32>,
    %31 = vector.extract_strided_slice %0 {offsets = [4, 0], sizes = [1, 256], strides = [1, 1]} : vector<9x256xf32> to vector<1x256xf32>
    %32 = vector.broadcast %31 : vector<1x256xf32> to vector<4x256xf32>
    %33 = arith.mulf %10, %32 : vector<4x256xf32>
    %c16 = arith.constant 16 : index
    %c0_13 = arith.constant 0 : index
    %34 = vector.load %arg9[%c16, %c0_13] : memref<36x256xf32, #tpu.memory_space<vmem>>, vector<4x256xf32>
    tpu.vector_store %arg9[%c16, %c0_13], %33 {strides = array<i32>} : memref<36x256xf32, #tpu.memory_space<vmem>>, vector<4x256xf32>,
    %c255_i32 = arith.constant 255 : i32
    %35 = tpu.dynamic_rotate %10 by %c255_i32 dim 1 : vector<4x256xf32>, i32 -> vector<4x256xf32>
    %36 = vector.extract_strided_slice %0 {offsets = [5, 0], sizes = [1, 256], strides = [1, 1]} : vector<9x256xf32> to vector<1x256xf32>
    %37 = vector.broadcast %36 : vector<1x256xf32> to vector<4x256xf32>
    %38 = arith.mulf %35, %37 : vector<4x256xf32>
    %c20 = arith.constant 20 : index
    %c0_14 = arith.constant 0 : index
    %39 = vector.load %arg9[%c20, %c0_14] : memref<36x256xf32, #tpu.memory_space<vmem>>, vector<4x256xf32>
    tpu.vector_store %arg9[%c20, %c0_14], %38 {strides = array<i32>} : memref<36x256xf32, #tpu.memory_space<vmem>>, vector<4x256xf32>,
    %c241_i32 = arith.constant 241 : i32
    %40 = tpu.dynamic_rotate %10 by %c241_i32 dim 1 : vector<4x256xf32>, i32 -> vector<4x256xf32>
    %41 = vector.extract_strided_slice %0 {offsets = [6, 0], sizes = [1, 256], strides = [1, 1]} : vector<9x256xf32> to vector<1x256xf32>
    %42 = vector.broadcast %41 : vector<1x256xf32> to vector<4x256xf32>
    %43 = arith.mulf %40, %42 : vector<4x256xf32>
    %c24 = arith.constant 24 : index
    %c0_15 = arith.constant 0 : index
    %44 = vector.load %arg9[%c24, %c0_15] : memref<36x256xf32, #tpu.memory_space<vmem>>, vector<4x256xf32>
    tpu.vector_store %arg9[%c24, %c0_15], %43 {strides = array<i32>} : memref<36x256xf32, #tpu.memory_space<vmem>>, vector<4x256xf32>,
    %c240_i32 = arith.constant 240 : i32
    %45 = tpu.dynamic_rotate %10 by %c240_i32 dim 1 : vector<4x256xf32>, i32 -> vector<4x256xf32>
    %46 = vector.extract_strided_slice %0 {offsets = [7, 0], sizes = [1, 256], strides = [1, 1]} : vector<9x256xf32> to vector<1x256xf32>
    %47 = vector.broadcast %46 : vector<1x256xf32> to vector<4x256xf32>
    %48 = arith.mulf %45, %47 : vector<4x256xf32>
    %c28 = arith.constant 28 : index
    %c0_16 = arith.constant 0 : index
    %49 = vector.load %arg9[%c28, %c0_16] : memref<36x256xf32, #tpu.memory_space<vmem>>, vector<4x256xf32>
    tpu.vector_store %arg9[%c28, %c0_16], %48 {strides = array<i32>} : memref<36x256xf32, #tpu.memory_space<vmem>>, vector<4x256xf32>,
    %c239_i32 = arith.constant 239 : i32
    %50 = tpu.dynamic_rotate %10 by %c239_i32 dim 1 : vector<4x256xf32>, i32 -> vector<4x256xf32>
    %51 = vector.extract_strided_slice %0 {offsets = [8, 0], sizes = [1, 256], strides = [1, 1]} : vector<9x256xf32> to vector<1x256xf32>
    %52 = vector.broadcast %51 : vector<1x256xf32> to vector<4x256xf32>
    %53 = arith.mulf %50, %52 : vector<4x256xf32>
    %c32 = arith.constant 32 : index
    %c0_17 = arith.constant 0 : index
    %54 = vector.load %arg9[%c32, %c0_17] : memref<36x256xf32, #tpu.memory_space<vmem>>, vector<4x256xf32>
    tpu.vector_store %arg9[%c32, %c0_17], %53 {strides = array<i32>} : memref<36x256xf32, #tpu.memory_space<vmem>>, vector<4x256xf32>,
    %c0_18 = arith.constant 0 : index
    %c0_19 = arith.constant 0 : index
    %55 = vector.load %arg4[%c0_18, %c0_19] : memref<8x36xf32, #tpu.memory_space<vmem>>, vector<8x36xf32>
    %c0_20 = arith.constant 0 : index
    %c0_21 = arith.constant 0 : index
    %56 = vector.load %arg9[%c0_20, %c0_21] : memref<36x256xf32, #tpu.memory_space<vmem>>, vector<36x256xf32>
    %cst_22 = arith.constant dense<0.000000e+00> : vector<8x256xf32>
    %57 = tpu.matmul %55, %56, %cst_22 {dimension_numbers = #tpu.dot_dimension_numbers<[1], [0], [0], [1], [0, 0, 1, 1], [], []>} : vector<8x36xf32>, vector<36x256xf32>, vector<8x256xf32> -> vector<8x256xf32>
    %c0_23 = arith.constant 0 : index
    %c0_24 = arith.constant 0 : index
    %58 = vector.load %arg5[%c0_23, %c0_24] : memref<8x1xf32, #tpu.memory_space<vmem>>, vector<8x1xf32>
    %59 = vector.broadcast %58 : vector<8x1xf32> to vector<8x256xf32>
    %60 = arith.addf %57, %59 : vector<8x256xf32>
    %c0_25 = arith.constant 0 : index
    %c0_26 = arith.constant 0 : index
    %c0_27 = arith.constant 0 : index
    %61 = vector.load %arg7[%c0_25, %c0_26, %c0_27] : memref<1x8x256xf32, #tpu.memory_space<vmem>>, vector<1x8x256xf32>
    %62 = vector.shape_cast %61 : vector<1x8x256xf32> to vector<8x256xf32>
    %63 = vector.shape_cast %60 : vector<8x256xf32> to vector<1x8x256xf32>
    tpu.vector_store %arg7[%c0_25, %c0_26, %c0_27], %63 {strides = array<i32>} : memref<1x8x256xf32, #tpu.memory_space<vmem>>, vector<1x8x256xf32>,
    %cst_28 = arith.constant dense<0.000000e+00> : vector<8xf32>
    %64 = vector.multi_reduction <add>, %60, %cst_28 [1] : vector<8x256xf32> to vector<8xf32>
    %65 = vector.shape_cast %64 : vector<8xf32> to vector<8x1xf32>
    %66 = arith.mulf %60, %60 : vector<8x256xf32>
    %cst_29 = arith.constant dense<0.000000e+00> : vector<8xf32>
    %67 = vector.multi_reduction <add>, %66, %cst_29 [1] : vector<8x256xf32> to vector<8xf32>
    %68 = vector.shape_cast %67 : vector<8xf32> to vector<8x1xf32>
    %69 = tpu.concatenate %65, %68 in 1 : vector<8x1xf32>, vector<8x1xf32> -> vector<8x2xf32>
    %c0_30 = arith.constant 0 : index
    %c0_31 = arith.constant 0 : index
    %c0_32 = arith.constant 0 : index
    %70 = vector.load %arg8[%c0_30, %c0_31, %c0_32] : memref<1x8x2xf32, #tpu.memory_space<vmem>>, vector<1x8x2xf32>
    %71 = vector.shape_cast %70 : vector<1x8x2xf32> to vector<8x2xf32>
    %72 = vector.shape_cast %69 : vector<8x2xf32> to vector<1x8x2xf32>
    tpu.vector_store %arg8[%c0_30, %c0_31, %c0_32], %72 {strides = array<i32>} : memref<1x8x2xf32, #tpu.memory_space<vmem>>, vector<1x8x2xf32>,
    return
  }
  func.func @transform_0(%arg0: i32) -> (i32, i32, i32) {
    %c0_i32 = arith.constant 0 : i32
    %c0_i32_0 = arith.constant 0 : i32
    %c0_i32_1 = arith.constant 0 : i32
    return %arg0, %c0_i32, %c0_i32_0 : i32, i32, i32
  }
  func.func @transform_1(%arg0: i32) -> (i32, i32) {
    %c0_i32 = arith.constant 0 : i32
    %c0_i32_0 = arith.constant 0 : i32
    %c0_i32_1 = arith.constant 0 : i32
    return %c0_i32, %c0_i32_0 : i32, i32
  }
  func.func @transform_2(%arg0: i32) -> (i32, i32) {
    %c0_i32 = arith.constant 0 : i32
    %c0_i32_0 = arith.constant 0 : i32
    %c0_i32_1 = arith.constant 0 : i32
    return %c0_i32, %c0_i32_0 : i32, i32
  }
  func.func @transform_3(%arg0: i32) -> (i32, i32) {
    %c0_i32 = arith.constant 0 : i32
    %c0_i32_0 = arith.constant 0 : i32
    %c0_i32_1 = arith.constant 0 : i32
    return %c0_i32, %c0_i32_0 : i32, i32
  }
  func.func @transform_4(%arg0: i32) -> (i32, i32) {
    %c0_i32 = arith.constant 0 : i32
    %c0_i32_0 = arith.constant 0 : i32
    %c0_i32_1 = arith.constant 0 : i32
    return %c0_i32, %c0_i32_0 : i32, i32
  }
  func.func @transform_5(%arg0: i32) -> (i32, i32) {
    %c0_i32 = arith.constant 0 : i32
    %c0_i32_0 = arith.constant 0 : i32
    %c0_i32_1 = arith.constant 0 : i32
    return %c0_i32, %c0_i32_0 : i32, i32
  }
  func.func @transform_6(%arg0: i32) -> (i32, i32, i32) {
    %c0_i32 = arith.constant 0 : i32
    %c0_i32_0 = arith.constant 0 : i32
    %c0_i32_1 = arith.constant 0 : i32
    return %arg0, %c0_i32, %c0_i32_0 : i32, i32, i32
  }
  func.func @transform_7(%arg0: i32) -> (i32, i32, i32) {
    %c0_i32 = arith.constant 0 : i32
    %c0_i32_0 = arith.constant 0 : i32
    %c0_i32_1 = arith.constant 0 : i32
    return %arg0, %c0_i32, %c0_i32_0 : i32, i32, i32
  }
}

module attributes {stable_mosaic.version = 11 : i64} {
  func.func @_res_part2_kernel(%arg0: i32, %arg1: memref<1x8x256xf32, #tpu.memory_space<vmem>>, %arg2: memref<1x4x256xf32, #tpu.memory_space<vmem>>, %arg3: memref<8x1xf32, #tpu.memory_space<vmem>>, %arg4: memref<8x1xf32, #tpu.memory_space<vmem>>, %arg5: memref<8x108xf32, #tpu.memory_space<vmem>>, %arg6: memref<8x1xf32, #tpu.memory_space<vmem>>, %arg7: memref<9x256xf32, #tpu.memory_space<vmem>>, %arg8: memref<1x8x256xf32, #tpu.memory_space<vmem>>, %arg9: memref<108x256xf32, #tpu.memory_space<vmem>>) attributes {dimension_semantics = [#tpu.dimension_semantics<parallel>], iteration_bounds = array<i64: 2>, scalar_prefetch = 0 : i64, scratch_operands = 1 : i64, tpu.core_type = #tpu.core_type<tc>, window_params = [{transform_indices = @transform_0, window_bounds = array<i64: 1, 8, 256>}, {transform_indices = @transform_1, window_bounds = array<i64: 1, 4, 256>}, {pipeline_mode = #tpu.pipeline_mode<synchronous>, transform_indices = @transform_2, window_bounds = array<i64: 8, 1>}, {pipeline_mode = #tpu.pipeline_mode<synchronous>, transform_indices = @transform_3, window_bounds = array<i64: 8, 1>}, {pipeline_mode = #tpu.pipeline_mode<synchronous>, transform_indices = @transform_4, window_bounds = array<i64: 8, 108>}, {pipeline_mode = #tpu.pipeline_mode<synchronous>, transform_indices = @transform_5, window_bounds = array<i64: 8, 1>}, {pipeline_mode = #tpu.pipeline_mode<synchronous>, transform_indices = @transform_6, window_bounds = array<i64: 9, 256>}, {transform_indices = @transform_7, window_bounds = array<i64: 1, 8, 256>}]} {
    %c0 = arith.constant 0 : index
    %c0_0 = arith.constant 0 : index
    %0 = vector.load %arg7[%c0, %c0_0] : memref<9x256xf32, #tpu.memory_space<vmem>>, vector<9x256xf32>
    %c0_1 = arith.constant 0 : index
    %c0_2 = arith.constant 0 : index
    %c0_3 = arith.constant 0 : index
    %1 = vector.load %arg1[%c0_1, %c0_2, %c0_3] : memref<1x8x256xf32, #tpu.memory_space<vmem>>, vector<1x8x256xf32>
    %2 = vector.shape_cast %1 : vector<1x8x256xf32> to vector<8x256xf32>
    %c0_4 = arith.constant 0 : index
    %c0_5 = arith.constant 0 : index
    %3 = vector.load %arg3[%c0_4, %c0_5] : memref<8x1xf32, #tpu.memory_space<vmem>>, vector<8x1xf32>
    %4 = vector.broadcast %3 : vector<8x1xf32> to vector<8x256xf32>
    %5 = arith.mulf %2, %4 : vector<8x256xf32>
    %c0_6 = arith.constant 0 : index
    %c0_7 = arith.constant 0 : index
    %6 = vector.load %arg4[%c0_6, %c0_7] : memref<8x1xf32, #tpu.memory_space<vmem>>, vector<8x1xf32>
    %7 = vector.broadcast %6 : vector<8x1xf32> to vector<8x256xf32>
    %8 = arith.addf %5, %7 : vector<8x256xf32>
    %cst = arith.constant 0.000000e+00 : f32
    %9 = vector.broadcast %cst : f32 to vector<8x256xf32>
    %10 = arith.maximumf %8, %9 : vector<8x256xf32>
    %c17_i32 = arith.constant 17 : i32
    %11 = tpu.dynamic_rotate %10 by %c17_i32 dim 1 : vector<8x256xf32>, i32 -> vector<8x256xf32>
    %12 = vector.extract_strided_slice %0 {offsets = [0, 0], sizes = [1, 256], strides = [1, 1]} : vector<9x256xf32> to vector<1x256xf32>
    %13 = vector.broadcast %12 : vector<1x256xf32> to vector<8x256xf32>
    %14 = arith.mulf %11, %13 : vector<8x256xf32>
    %c0_8 = arith.constant 0 : index
    %c0_9 = arith.constant 0 : index
    %15 = vector.load %arg9[%c0_8, %c0_9] : memref<108x256xf32, #tpu.memory_space<vmem>>, vector<8x256xf32>
    tpu.vector_store %arg9[%c0_8, %c0_9], %14 {strides = array<i32>} : memref<108x256xf32, #tpu.memory_space<vmem>>, vector<8x256xf32>,
    %c16_i32 = arith.constant 16 : i32
    %16 = tpu.dynamic_rotate %10 by %c16_i32 dim 1 : vector<8x256xf32>, i32 -> vector<8x256xf32>
    %17 = vector.extract_strided_slice %0 {offsets = [1, 0], sizes = [1, 256], strides = [1, 1]} : vector<9x256xf32> to vector<1x256xf32>
    %18 = vector.broadcast %17 : vector<1x256xf32> to vector<8x256xf32>
    %19 = arith.mulf %16, %18 : vector<8x256xf32>
    %c8 = arith.constant 8 : index
    %c0_10 = arith.constant 0 : index
    %20 = vector.load %arg9[%c8, %c0_10] : memref<108x256xf32, #tpu.memory_space<vmem>>, vector<8x256xf32>
    tpu.vector_store %arg9[%c8, %c0_10], %19 {strides = array<i32>} : memref<108x256xf32, #tpu.memory_space<vmem>>, vector<8x256xf32>,
    %c15_i32 = arith.constant 15 : i32
    %21 = tpu.dynamic_rotate %10 by %c15_i32 dim 1 : vector<8x256xf32>, i32 -> vector<8x256xf32>
    %22 = vector.extract_strided_slice %0 {offsets = [2, 0], sizes = [1, 256], strides = [1, 1]} : vector<9x256xf32> to vector<1x256xf32>
    %23 = vector.broadcast %22 : vector<1x256xf32> to vector<8x256xf32>
    %24 = arith.mulf %21, %23 : vector<8x256xf32>
    %c16 = arith.constant 16 : index
    %c0_11 = arith.constant 0 : index
    %25 = vector.load %arg9[%c16, %c0_11] : memref<108x256xf32, #tpu.memory_space<vmem>>, vector<8x256xf32>
    tpu.vector_store %arg9[%c16, %c0_11], %24 {strides = array<i32>} : memref<108x256xf32, #tpu.memory_space<vmem>>, vector<8x256xf32>,
    %c1_i32 = arith.constant 1 : i32
    %26 = tpu.dynamic_rotate %10 by %c1_i32 dim 1 : vector<8x256xf32>, i32 -> vector<8x256xf32>
    %27 = vector.extract_strided_slice %0 {offsets = [3, 0], sizes = [1, 256], strides = [1, 1]} : vector<9x256xf32> to vector<1x256xf32>
    %28 = vector.broadcast %27 : vector<1x256xf32> to vector<8x256xf32>
    %29 = arith.mulf %26, %28 : vector<8x256xf32>
    %c24 = arith.constant 24 : index
    %c0_12 = arith.constant 0 : index
    %30 = vector.load %arg9[%c24, %c0_12] : memref<108x256xf32, #tpu.memory_space<vmem>>, vector<8x256xf32>
    tpu.vector_store %arg9[%c24, %c0_12], %29 {strides = array<i32>} : memref<108x256xf32, #tpu.memory_space<vmem>>, vector<8x256xf32>,
    %31 = vector.extract_strided_slice %0 {offsets = [4, 0], sizes = [1, 256], strides = [1, 1]} : vector<9x256xf32> to vector<1x256xf32>
    %32 = vector.broadcast %31 : vector<1x256xf32> to vector<8x256xf32>
    %33 = arith.mulf %10, %32 : vector<8x256xf32>
    %c32 = arith.constant 32 : index
    %c0_13 = arith.constant 0 : index
    %34 = vector.load %arg9[%c32, %c0_13] : memref<108x256xf32, #tpu.memory_space<vmem>>, vector<8x256xf32>
    tpu.vector_store %arg9[%c32, %c0_13], %33 {strides = array<i32>} : memref<108x256xf32, #tpu.memory_space<vmem>>, vector<8x256xf32>,
    %c255_i32 = arith.constant 255 : i32
    %35 = tpu.dynamic_rotate %10 by %c255_i32 dim 1 : vector<8x256xf32>, i32 -> vector<8x256xf32>
    %36 = vector.extract_strided_slice %0 {offsets = [5, 0], sizes = [1, 256], strides = [1, 1]} : vector<9x256xf32> to vector<1x256xf32>
    %37 = vector.broadcast %36 : vector<1x256xf32> to vector<8x256xf32>
    %38 = arith.mulf %35, %37 : vector<8x256xf32>
    %c40 = arith.constant 40 : index
    %c0_14 = arith.constant 0 : index
    %39 = vector.load %arg9[%c40, %c0_14] : memref<108x256xf32, #tpu.memory_space<vmem>>, vector<8x256xf32>
    tpu.vector_store %arg9[%c40, %c0_14], %38 {strides = array<i32>} : memref<108x256xf32, #tpu.memory_space<vmem>>, vector<8x256xf32>,
    %c241_i32 = arith.constant 241 : i32
    %40 = tpu.dynamic_rotate %10 by %c241_i32 dim 1 : vector<8x256xf32>, i32 -> vector<8x256xf32>
    %41 = vector.extract_strided_slice %0 {offsets = [6, 0], sizes = [1, 256], strides = [1, 1]} : vector<9x256xf32> to vector<1x256xf32>
    %42 = vector.broadcast %41 : vector<1x256xf32> to vector<8x256xf32>
    %43 = arith.mulf %40, %42 : vector<8x256xf32>
    %c48 = arith.constant 48 : index
    %c0_15 = arith.constant 0 : index
    %44 = vector.load %arg9[%c48, %c0_15] : memref<108x256xf32, #tpu.memory_space<vmem>>, vector<8x256xf32>
    tpu.vector_store %arg9[%c48, %c0_15], %43 {strides = array<i32>} : memref<108x256xf32, #tpu.memory_space<vmem>>, vector<8x256xf32>,
    %c240_i32 = arith.constant 240 : i32
    %45 = tpu.dynamic_rotate %10 by %c240_i32 dim 1 : vector<8x256xf32>, i32 -> vector<8x256xf32>
    %46 = vector.extract_strided_slice %0 {offsets = [7, 0], sizes = [1, 256], strides = [1, 1]} : vector<9x256xf32> to vector<1x256xf32>
    %47 = vector.broadcast %46 : vector<1x256xf32> to vector<8x256xf32>
    %48 = arith.mulf %45, %47 : vector<8x256xf32>
    %c56 = arith.constant 56 : index
    %c0_16 = arith.constant 0 : index
    %49 = vector.load %arg9[%c56, %c0_16] : memref<108x256xf32, #tpu.memory_space<vmem>>, vector<8x256xf32>
    tpu.vector_store %arg9[%c56, %c0_16], %48 {strides = array<i32>} : memref<108x256xf32, #tpu.memory_space<vmem>>, vector<8x256xf32>,
    %c239_i32 = arith.constant 239 : i32
    %50 = tpu.dynamic_rotate %10 by %c239_i32 dim 1 : vector<8x256xf32>, i32 -> vector<8x256xf32>
    %51 = vector.extract_strided_slice %0 {offsets = [8, 0], sizes = [1, 256], strides = [1, 1]} : vector<9x256xf32> to vector<1x256xf32>
    %52 = vector.broadcast %51 : vector<1x256xf32> to vector<8x256xf32>
    %53 = arith.mulf %50, %52 : vector<8x256xf32>
    %c64 = arith.constant 64 : index
    %c0_17 = arith.constant 0 : index
    %54 = vector.load %arg9[%c64, %c0_17] : memref<108x256xf32, #tpu.memory_space<vmem>>, vector<8x256xf32>
    tpu.vector_store %arg9[%c64, %c0_17], %53 {strides = array<i32>} : memref<108x256xf32, #tpu.memory_space<vmem>>, vector<8x256xf32>,
    %c0_18 = arith.constant 0 : index
    %c0_19 = arith.constant 0 : index
    %c0_20 = arith.constant 0 : index
    %55 = vector.load %arg2[%c0_18, %c0_19, %c0_20] : memref<1x4x256xf32, #tpu.memory_space<vmem>>, vector<1x4x256xf32>
    %56 = vector.shape_cast %55 : vector<1x4x256xf32> to vector<4x256xf32>
    %c17_i32_21 = arith.constant 17 : i32
    %57 = tpu.dynamic_rotate %56 by %c17_i32_21 dim 1 : vector<4x256xf32>, i32 -> vector<4x256xf32>
    %58 = vector.extract_strided_slice %0 {offsets = [0, 0], sizes = [1, 256], strides = [1, 1]} : vector<9x256xf32> to vector<1x256xf32>
    %59 = vector.broadcast %58 : vector<1x256xf32> to vector<4x256xf32>
    %60 = arith.mulf %57, %59 : vector<4x256xf32>
    %c72 = arith.constant 72 : index
    %c0_22 = arith.constant 0 : index
    %61 = vector.load %arg9[%c72, %c0_22] : memref<108x256xf32, #tpu.memory_space<vmem>>, vector<4x256xf32>
    tpu.vector_store %arg9[%c72, %c0_22], %60 {strides = array<i32>} : memref<108x256xf32, #tpu.memory_space<vmem>>, vector<4x256xf32>,
    %c16_i32_23 = arith.constant 16 : i32
    %62 = tpu.dynamic_rotate %56 by %c16_i32_23 dim 1 : vector<4x256xf32>, i32 -> vector<4x256xf32>
    %63 = vector.extract_strided_slice %0 {offsets = [1, 0], sizes = [1, 256], strides = [1, 1]} : vector<9x256xf32> to vector<1x256xf32>
    %64 = vector.broadcast %63 : vector<1x256xf32> to vector<4x256xf32>
    %65 = arith.mulf %62, %64 : vector<4x256xf32>
    %c76 = arith.constant 76 : index
    %c0_24 = arith.constant 0 : index
    %66 = vector.load %arg9[%c76, %c0_24] : memref<108x256xf32, #tpu.memory_space<vmem>>, vector<4x256xf32>
    tpu.vector_store %arg9[%c76, %c0_24], %65 {strides = array<i32>} : memref<108x256xf32, #tpu.memory_space<vmem>>, vector<4x256xf32>,
    %c15_i32_25 = arith.constant 15 : i32
    %67 = tpu.dynamic_rotate %56 by %c15_i32_25 dim 1 : vector<4x256xf32>, i32 -> vector<4x256xf32>
    %68 = vector.extract_strided_slice %0 {offsets = [2, 0], sizes = [1, 256], strides = [1, 1]} : vector<9x256xf32> to vector<1x256xf32>
    %69 = vector.broadcast %68 : vector<1x256xf32> to vector<4x256xf32>
    %70 = arith.mulf %67, %69 : vector<4x256xf32>
    %c80 = arith.constant 80 : index
    %c0_26 = arith.constant 0 : index
    %71 = vector.load %arg9[%c80, %c0_26] : memref<108x256xf32, #tpu.memory_space<vmem>>, vector<4x256xf32>
    tpu.vector_store %arg9[%c80, %c0_26], %70 {strides = array<i32>} : memref<108x256xf32, #tpu.memory_space<vmem>>, vector<4x256xf32>,
    %c1_i32_27 = arith.constant 1 : i32
    %72 = tpu.dynamic_rotate %56 by %c1_i32_27 dim 1 : vector<4x256xf32>, i32 -> vector<4x256xf32>
    %73 = vector.extract_strided_slice %0 {offsets = [3, 0], sizes = [1, 256], strides = [1, 1]} : vector<9x256xf32> to vector<1x256xf32>
    %74 = vector.broadcast %73 : vector<1x256xf32> to vector<4x256xf32>
    %75 = arith.mulf %72, %74 : vector<4x256xf32>
    %c84 = arith.constant 84 : index
    %c0_28 = arith.constant 0 : index
    %76 = vector.load %arg9[%c84, %c0_28] : memref<108x256xf32, #tpu.memory_space<vmem>>, vector<4x256xf32>
    tpu.vector_store %arg9[%c84, %c0_28], %75 {strides = array<i32>} : memref<108x256xf32, #tpu.memory_space<vmem>>, vector<4x256xf32>,
    %77 = vector.extract_strided_slice %0 {offsets = [4, 0], sizes = [1, 256], strides = [1, 1]} : vector<9x256xf32> to vector<1x256xf32>
    %78 = vector.broadcast %77 : vector<1x256xf32> to vector<4x256xf32>
    %79 = arith.mulf %56, %78 : vector<4x256xf32>
    %c88 = arith.constant 88 : index
    %c0_29 = arith.constant 0 : index
    %80 = vector.load %arg9[%c88, %c0_29] : memref<108x256xf32, #tpu.memory_space<vmem>>, vector<4x256xf32>
    tpu.vector_store %arg9[%c88, %c0_29], %79 {strides = array<i32>} : memref<108x256xf32, #tpu.memory_space<vmem>>, vector<4x256xf32>,
    %c255_i32_30 = arith.constant 255 : i32
    %81 = tpu.dynamic_rotate %56 by %c255_i32_30 dim 1 : vector<4x256xf32>, i32 -> vector<4x256xf32>
    %82 = vector.extract_strided_slice %0 {offsets = [5, 0], sizes = [1, 256], strides = [1, 1]} : vector<9x256xf32> to vector<1x256xf32>
    %83 = vector.broadcast %82 : vector<1x256xf32> to vector<4x256xf32>
    %84 = arith.mulf %81, %83 : vector<4x256xf32>
    %c92 = arith.constant 92 : index
    %c0_31 = arith.constant 0 : index
    %85 = vector.load %arg9[%c92, %c0_31] : memref<108x256xf32, #tpu.memory_space<vmem>>, vector<4x256xf32>
    tpu.vector_store %arg9[%c92, %c0_31], %84 {strides = array<i32>} : memref<108x256xf32, #tpu.memory_space<vmem>>, vector<4x256xf32>,
    %c241_i32_32 = arith.constant 241 : i32
    %86 = tpu.dynamic_rotate %56 by %c241_i32_32 dim 1 : vector<4x256xf32>, i32 -> vector<4x256xf32>
    %87 = vector.extract_strided_slice %0 {offsets = [6, 0], sizes = [1, 256], strides = [1, 1]} : vector<9x256xf32> to vector<1x256xf32>
    %88 = vector.broadcast %87 : vector<1x256xf32> to vector<4x256xf32>
    %89 = arith.mulf %86, %88 : vector<4x256xf32>
    %c96 = arith.constant 96 : index
    %c0_33 = arith.constant 0 : index
    %90 = vector.load %arg9[%c96, %c0_33] : memref<108x256xf32, #tpu.memory_space<vmem>>, vector<4x256xf32>
    tpu.vector_store %arg9[%c96, %c0_33], %89 {strides = array<i32>} : memref<108x256xf32, #tpu.memory_space<vmem>>, vector<4x256xf32>,
    %c240_i32_34 = arith.constant 240 : i32
    %91 = tpu.dynamic_rotate %56 by %c240_i32_34 dim 1 : vector<4x256xf32>, i32 -> vector<4x256xf32>
    %92 = vector.extract_strided_slice %0 {offsets = [7, 0], sizes = [1, 256], strides = [1, 1]} : vector<9x256xf32> to vector<1x256xf32>
    %93 = vector.broadcast %92 : vector<1x256xf32> to vector<4x256xf32>
    %94 = arith.mulf %91, %93 : vector<4x256xf32>
    %c100 = arith.constant 100 : index
    %c0_35 = arith.constant 0 : index
    %95 = vector.load %arg9[%c100, %c0_35] : memref<108x256xf32, #tpu.memory_space<vmem>>, vector<4x256xf32>
    tpu.vector_store %arg9[%c100, %c0_35], %94 {strides = array<i32>} : memref<108x256xf32, #tpu.memory_space<vmem>>, vector<4x256xf32>,
    %c239_i32_36 = arith.constant 239 : i32
    %96 = tpu.dynamic_rotate %56 by %c239_i32_36 dim 1 : vector<4x256xf32>, i32 -> vector<4x256xf32>
    %97 = vector.extract_strided_slice %0 {offsets = [8, 0], sizes = [1, 256], strides = [1, 1]} : vector<9x256xf32> to vector<1x256xf32>
    %98 = vector.broadcast %97 : vector<1x256xf32> to vector<4x256xf32>
    %99 = arith.mulf %96, %98 : vector<4x256xf32>
    %c104 = arith.constant 104 : index
    %c0_37 = arith.constant 0 : index
    %100 = vector.load %arg9[%c104, %c0_37] : memref<108x256xf32, #tpu.memory_space<vmem>>, vector<4x256xf32>
    tpu.vector_store %arg9[%c104, %c0_37], %99 {strides = array<i32>} : memref<108x256xf32, #tpu.memory_space<vmem>>, vector<4x256xf32>,
    %c0_38 = arith.constant 0 : index
    %c0_39 = arith.constant 0 : index
    %101 = vector.load %arg5[%c0_38, %c0_39] : memref<8x108xf32, #tpu.memory_space<vmem>>, vector<8x108xf32>
    %c0_40 = arith.constant 0 : index
    %c0_41 = arith.constant 0 : index
    %102 = vector.load %arg9[%c0_40, %c0_41] : memref<108x256xf32, #tpu.memory_space<vmem>>, vector<108x256xf32>
    %cst_42 = arith.constant dense<0.000000e+00> : vector<8x256xf32>
    %103 = tpu.matmul %101, %102, %cst_42 {dimension_numbers = #tpu.dot_dimension_numbers<[1], [0], [0], [1], [0, 0, 1, 1], [], []>} : vector<8x108xf32>, vector<108x256xf32>, vector<8x256xf32> -> vector<8x256xf32>
    %c0_43 = arith.constant 0 : index
    %c0_44 = arith.constant 0 : index
    %104 = vector.load %arg6[%c0_43, %c0_44] : memref<8x1xf32, #tpu.memory_space<vmem>>, vector<8x1xf32>
    %105 = vector.broadcast %104 : vector<8x1xf32> to vector<8x256xf32>
    %106 = arith.addf %103, %105 : vector<8x256xf32>
    %c0_45 = arith.constant 0 : index
    %c0_46 = arith.constant 0 : index
    %c0_47 = arith.constant 0 : index
    %107 = vector.load %arg8[%c0_45, %c0_46, %c0_47] : memref<1x8x256xf32, #tpu.memory_space<vmem>>, vector<1x8x256xf32>
    %108 = vector.shape_cast %107 : vector<1x8x256xf32> to vector<8x256xf32>
    %109 = vector.shape_cast %106 : vector<8x256xf32> to vector<1x8x256xf32>
    tpu.vector_store %arg8[%c0_45, %c0_46, %c0_47], %109 {strides = array<i32>} : memref<1x8x256xf32, #tpu.memory_space<vmem>>, vector<1x8x256xf32>,
    return
  }
  func.func @transform_0(%arg0: i32) -> (i32, i32, i32) {
    %c0_i32 = arith.constant 0 : i32
    %c0_i32_0 = arith.constant 0 : i32
    %c0_i32_1 = arith.constant 0 : i32
    return %arg0, %c0_i32, %c0_i32_0 : i32, i32, i32
  }
  func.func @transform_1(%arg0: i32) -> (i32, i32, i32) {
    %c0_i32 = arith.constant 0 : i32
    %c0_i32_0 = arith.constant 0 : i32
    %c0_i32_1 = arith.constant 0 : i32
    return %arg0, %c0_i32, %c0_i32_0 : i32, i32, i32
  }
  func.func @transform_2(%arg0: i32) -> (i32, i32) {
    %c0_i32 = arith.constant 0 : i32
    %c0_i32_0 = arith.constant 0 : i32
    %c0_i32_1 = arith.constant 0 : i32
    return %c0_i32, %c0_i32_0 : i32, i32
  }
  func.func @transform_3(%arg0: i32) -> (i32, i32) {
    %c0_i32 = arith.constant 0 : i32
    %c0_i32_0 = arith.constant 0 : i32
    %c0_i32_1 = arith.constant 0 : i32
    return %c0_i32, %c0_i32_0 : i32, i32
  }
  func.func @transform_4(%arg0: i32) -> (i32, i32) {
    %c0_i32 = arith.constant 0 : i32
    %c0_i32_0 = arith.constant 0 : i32
    %c0_i32_1 = arith.constant 0 : i32
    return %c0_i32, %c0_i32_0 : i32, i32
  }
  func.func @transform_5(%arg0: i32) -> (i32, i32) {
    %c0_i32 = arith.constant 0 : i32
    %c0_i32_0 = arith.constant 0 : i32
    %c0_i32_1 = arith.constant 0 : i32
    return %c0_i32, %c0_i32_0 : i32, i32
  }
  func.func @transform_6(%arg0: i32) -> (i32, i32) {
    %c0_i32 = arith.constant 0 : i32
    %c0_i32_0 = arith.constant 0 : i32
    %c0_i32_1 = arith.constant 0 : i32
    return %c0_i32, %c0_i32_0 : i32, i32
  }
  func.func @transform_7(%arg0: i32) -> (i32, i32, i32) {
    %c0_i32 = arith.constant 0 : i32
    %c0_i32_0 = arith.constant 0 : i32
    %c0_i32_1 = arith.constant 0 : i32
    return %arg0, %c0_i32, %c0_i32_0 : i32, i32, i32
  }
}

</mosaic_0001>

<llo_original>
// kernel: residual_block_forward.2
$region0: #{residual_block_forward.2}
  #allocation0 [shape = 'u32[]', space=smem, size = 0x4, offset = 0x4, fixed_abs, tag = 'smem constant byte address 0x4 - core index']
  #allocation1 [shape = 'u32[144,128]{1,0:T(1,128)}', space=vmem, size = 0x12000, scoped, tag = 'internal scratch']
  #allocation2 [shape = 'f32[36,256]{1,0:T(8,128)}', space=vmem, size = 0xa000, scoped, tag = 'scratch operand']
  %s0 = inlined_call_operand.vmem [shape: f32[2,4,256], index: 0, kind: input, shape index: {}]
  %s1 = inlined_call_operand.vmem [shape: f32[4,1], index: 1, kind: input, shape index: {}]
  %s2 = inlined_call_operand.vmem [shape: f32[4,1], index: 2, kind: input, shape index: {}]
  %s3 = inlined_call_operand.vmem [shape: f32[8,36], index: 3, kind: input, shape index: {}]
  %s4 = inlined_call_operand.vmem [shape: f32[8,1], index: 4, kind: input, shape index: {}]
  %s5 = inlined_call_operand.vmem [shape: f32[9,256], index: 5, kind: input, shape index: {}]
  %s6 = inlined_call_operand.vmem [shape: f32[2,8,256], index: 6, kind: output, shape index: {0}]
  %s7 = inlined_call_operand.vmem [shape: f32[2,8,2], index: 7, kind: output, shape index: {1}]
  %8 = xla_tuple %s6, %s7
  %s9 = sld [smem:[#allocation0]]
  $region65: #{residual_block_forward.2} parent=0
    _
  %s11 = ssub.s32 1, %s9
  %s12 = scalar_select 0, %s11, %s9
  loop: start=0, step=1, limit=4
  $region2: #{residual_block_forward.2} parent=0 // loop_pre_header
    _
  $region3: #{residual_block_forward.2} parent=0 // loop_header
    %s14 = sphi 0, %s18
    %p15 = scmp.ge.s32.totalorder %s14, 4
    %s24 = sphi 0, %s26
    %s27 = sphi 0, %s24
    %s28 = sphi 0, %s27
    %s44 = sphi 0, %s28
    %s48 = sphi 0, %s48
    %s50 = sphi 0, %s48
    %s51 = sphi 0, %s50
    %s65 = sphi 0, %s51
    %s69 = sphi 0, %s69
    %s71 = sphi 0, %s69
    %s72 = sphi 0, %s71
    %s86 = sphi 0, %s72
    %s90 = sphi 0, %s90
    %s92 = sphi 0, %s90
    %s93 = sphi 0, %s92
    %s107 = sphi 0, %s93
    %s111 = sphi 0, %s111
    %s113 = sphi 0, %s111
    %s114 = sphi 0, %s113
    %s128 = sphi 0, %s114
    %s132 = sphi 0, %s132
    %s134 = sphi 0, %s132
    %s135 = sphi 0, %s134
    %s149 = sphi 0, %s135
    %s155 = sphi 0, %s157
    %s158 = sphi 0, %s155
    %s159 = sphi 0, %s158
    %s175 = sphi 0, %s159
    %s181 = sphi 0, %s183
    %s184 = sphi 0, %s181
    %s185 = sphi 0, %s184
    %s201 = sphi 0, %s185
  $region4: #{residual_block_forward.2} parent=0 // loop_header_branch
    %17 = sbr.rel (%p15) target = $region8
  $region5: #{residual_block_forward.2} parent=0 // loop_body
    %s19 = ssub.s32 %s14, 1
    %s20 = ssub.s32 %s14, 2
    %s21 = sadd.s32 %s14, 1
    %s22 = ssub.s32 %s14, %s21
    %p23 = scmp.eq.s32.totalorder %s22, 0
    %s25 = sadd.s32 %s24, 1
    %s26 = scalar_select %p23, %s24, %s25
    %p29 = pneg %p23
    %p30 = scmp.eq.s32.totalorder %s14, 1
    %p31 = por %p29, %p30
    %p32 = scmp.ne.s32.totalorder %s24, %s27
    %p33 = scmp.eq.s32.totalorder %s14, 0
    %p34 = por %p32, %p33
    %p35 = scmp.ne.s32.totalorder %s24, %s27
    %p36 = scmp.eq.s32.totalorder %s19, 1
    %p37 = por %p35, %p36
    %p38 = scmp.ne.s32.totalorder %s27, %s28
    %p39 = scmp.eq.s32.totalorder %s19, 0
    %p40 = por %p38, %p39
    %p41 = scmp.ne.s32.totalorder %s27, %s28
    %p42 = scmp.eq.s32.totalorder %s20, 1
    %p43 = por %p41, %p42
    %p45 = scmp.ne.s32.totalorder %s28, %s44
    %p46 = scmp.eq.s32.totalorder %s20, 0
    %p47 = por %p45, %p46
    %s49 = sadd.s32 %s48, 1
    %p52 = scmp.eq.s32.totalorder %s14, 1
    %p53 = scmp.ne.s32.totalorder %s48, %s50
    %p54 = scmp.eq.s32.totalorder %s14, 0
    %p55 = por %p53, %p54
    %p56 = scmp.ne.s32.totalorder %s48, %s50
    %p57 = scmp.eq.s32.totalorder %s19, 1
    %p58 = por %p56, %p57
    %p59 = scmp.ne.s32.totalorder %s50, %s51
    %p60 = scmp.eq.s32.totalorder %s19, 0
    %p61 = por %p59, %p60
    %p62 = scmp.ne.s32.totalorder %s50, %s51
    %p63 = scmp.eq.s32.totalorder %s20, 1
    %p64 = por %p62, %p63
    %p66 = scmp.ne.s32.totalorder %s51, %s65
    %p67 = scmp.eq.s32.totalorder %s20, 0
    %p68 = por %p66, %p67
    %s70 = sadd.s32 %s69, 1
    %p73 = scmp.eq.s32.totalorder %s14, 1
    %p74 = scmp.ne.s32.totalorder %s69, %s71
    %p75 = scmp.eq.s32.totalorder %s14, 0
    %p76 = por %p74, %p75
    %p77 = scmp.ne.s32.totalorder %s69, %s71
    %p78 = scmp.eq.s32.totalorder %s19, 1
    %p79 = por %p77, %p78
    %p80 = scmp.ne.s32.totalorder %s71, %s72
    %p81 = scmp.eq.s32.totalorder %s19, 0
    %p82 = por %p80, %p81
    %p83 = scmp.ne.s32.totalorder %s71, %s72
    %p84 = scmp.eq.s32.totalorder %s20, 1
    %p85 = por %p83, %p84
    %p87 = scmp.ne.s32.totalorder %s72, %s86
    %p88 = scmp.eq.s32.totalorder %s20, 0
    %p89 = por %p87, %p88
    %s91 = sadd.s32 %s90, 1
    %p94 = scmp.eq.s32.totalorder %s14, 1
    %p95 = scmp.ne.s32.totalorder %s90, %s92
    %p96 = scmp.eq.s32.totalorder %s14, 0
    %p97 = por %p95, %p96
    %p98 = scmp.ne.s32.totalorder %s90, %s92
    %p99 = scmp.eq.s32.totalorder %s19, 1
    %p100 = por %p98, %p99
    %p101 = scmp.ne.s32.totalorder %s92, %s93
    %p102 = scmp.eq.s32.totalorder %s19, 0
    %p103 = por %p101, %p102
    %p104 = scmp.ne.s32.totalorder %s92, %s93
    %p105 = scmp.eq.s32.totalorder %s20, 1
    %p106 = por %p104, %p105
    %p108 = scmp.ne.s32.totalorder %s93, %s107
    %p109 = scmp.eq.s32.totalorder %s20, 0
    %p110 = por %p108, %p109
    %s112 = sadd.s32 %s111, 1
    %p115 = scmp.eq.s32.totalorder %s14, 1
    %p116 = scmp.ne.s32.totalorder %s111, %s113
    %p117 = scmp.eq.s32.totalorder %s14, 0
    %p118 = por %p116, %p117
    %p119 = scmp.ne.s32.totalorder %s111, %s113
    %p120 = scmp.eq.s32.totalorder %s19, 1
    %p121 = por %p119, %p120
    %p122 = scmp.ne.s32.totalorder %s113, %s114
    %p123 = scmp.eq.s32.totalorder %s19, 0
    %p124 = por %p122, %p123
    %p125 = scmp.ne.s32.totalorder %s113, %s114
    %p126 = scmp.eq.s32.totalorder %s20, 1
    %p127 = por %p125, %p126
    %p129 = scmp.ne.s32.totalorder %s114, %s128
    %p130 = scmp.eq.s32.totalorder %s20, 0
    %p131 = por %p129, %p130
    %s133 = sadd.s32 %s132, 1
    %p136 = scmp.eq.s32.totalorder %s14, 1
    %p137 = scmp.ne.s32.totalorder %s132, %s134
    %p138 = scmp.eq.s32.totalorder %s14, 0
    %p139 = por %p137, %p138
    %p140 = scmp.ne.s32.totalorder %s132, %s134
    %p141 = scmp.eq.s32.totalorder %s19, 1
    %p142 = por %p140, %p141
    %p143 = scmp.ne.s32.totalorder %s134, %s135
    %p144 = scmp.eq.s32.totalorder %s19, 0
    %p145 = por %p143, %p144
    %p146 = scmp.ne.s32.totalorder %s134, %s135
    %p147 = scmp.eq.s32.totalorder %s20, 1
    %p148 = por %p146, %p147
    %p150 = scmp.ne.s32.totalorder %s135, %s149
    %p151 = scmp.eq.s32.totalorder %s20, 0
    %p152 = por %p150, %p151
    %s153 = ssub.s32 %s14, %s21
    %p154 = scmp.eq.s32.totalorder %s153, 0
    %s156 = sadd.s32 %s155, 1
    %s157 = scalar_select %p154, %s155, %s156
    %p160 = pneg %p154
    %p161 = scmp.eq.s32.totalorder %s14, 1
    %p162 = por %p160, %p161
    %p163 = scmp.ne.s32.totalorder %s155, %s158
    %p164 = scmp.eq.s32.totalorder %s14, 0
    %p165 = por %p163, %p164
    %p166 = scmp.ne.s32.totalorder %s155, %s158
    %p167 = scmp.eq.s32.totalorder %s19, 1
    %p168 = por %p166, %p167
    %p169 = scmp.ne.s32.totalorder %s158, %s159
    %p170 = scmp.eq.s32.totalorder %s19, 0
    %p171 = por %p169, %p170
    %p172 = scmp.ne.s32.totalorder %s158, %s159
    %p173 = scmp.eq.s32.totalorder %s20, 1
    %p174 = por %p172, %p173
    %p176 = scmp.ne.s32.totalorder %s159, %s175
    %p177 = scmp.eq.s32.totalorder %s20, 0
    %p178 = por %p176, %p177
    %s179 = ssub.s32 %s14, %s21
    %p180 = scmp.eq.s32.totalorder %s179, 0
    %s182 = sadd.s32 %s181, 1
    %s183 = scalar_select %p180, %s181, %s182
    %p186 = pneg %p180
    %p187 = scmp.eq.s32.totalorder %s14, 1
    %p188 = por %p186, %p187
    %p189 = scmp.ne.s32.totalorder %s181, %s184
    %p190 = scmp.eq.s32.totalorder %s14, 0
    %p191 = por %p189, %p190
    %p192 = scmp.ne.s32.totalorder %s181, %s184
    %p193 = scmp.eq.s32.totalorder %s19, 1
    %p194 = por %p192, %p193
    %p195 = scmp.ne.s32.totalorder %s184, %s185
    %p196 = scmp.eq.s32.totalorder %s19, 0
    %p197 = por %p195, %p196
    %p198 = scmp.ne.s32.totalorder %s184, %s185
    %p199 = scmp.eq.s32.totalorder %s20, 1
    %p200 = por %p198, %p199
    %p202 = scmp.ne.s32.totalorder %s185, %s201
    %p203 = scmp.eq.s32.totalorder %s20, 0
    %p204 = por %p202, %p203
    %p205 = scmp.le.s32.totalorder 1, %s14
    %p206 = scmp.lt.s32.totalorder %s14, 3
    %p207 = pnand %p205, %p206
    %p208 = pneg %p207
    // Predicated region
    $region9: #{residual_block_forward.2} parent=5 // pred_check
      _
    $region10: #{residual_block_forward.2} parent=5 // pred_check_branch
      %210 = sbr.rel (%p207) target = $region12
    $region11: #{residual_block_forward.2} parent=5 // pred_region
      %s211 = ssub.s32 %s14, 1
      // Predicated region
      $region13: #{residual_block_forward.2} parent=11 // pred_check
        %p212 = pneg %p61
      $region14: #{residual_block_forward.2} parent=11 // pred_check_branch
        %214 = sbr.rel (%p212) target = $region16
      $region15: #{residual_block_forward.2} parent=11 // pred_region
        _
      $region16: #{residual_block_forward.2} parent=11 // pred_fallthru
        _
      // Predicated region
      $region17: #{residual_block_forward.2} parent=11 // pred_check
        %p215 = pneg %p82
      $region18: #{residual_block_forward.2} parent=11 // pred_check_branch
        %217 = sbr.rel (%p215) target = $region20
      $region19: #{residual_block_forward.2} parent=11 // pred_region
        _
      $region20: #{residual_block_forward.2} parent=11 // pred_fallthru
        _
      // Predicated region
      $region21: #{residual_block_forward.2} parent=11 // pred_check
        %p218 = pneg %p103
      $region22: #{residual_block_forward.2} parent=11 // pred_check_branch
        %220 = sbr.rel (%p218) target = $region24
      $region23: #{residual_block_forward.2} parent=11 // pred_region
        _
      $region24: #{residual_block_forward.2} parent=11 // pred_fallthru
        _
      // Predicated region
      $region25: #{residual_block_forward.2} parent=11 // pred_check
        %p221 = pneg %p124
      $region26: #{residual_block_forward.2} parent=11 // pred_check_branch
        %223 = sbr.rel (%p221) target = $region28
      $region27: #{residual_block_forward.2} parent=11 // pred_region
        _
      $region28: #{residual_block_forward.2} parent=11 // pred_fallthru
        _
      // Predicated region
      $region29: #{residual_block_forward.2} parent=11 // pred_check
        %p224 = pneg %p145
      $region30: #{residual_block_forward.2} parent=11 // pred_check_branch
        %226 = sbr.rel (%p224) target = $region32
      $region31: #{residual_block_forward.2} parent=11 // pred_region
        _
      $region32: #{residual_block_forward.2} parent=11 // pred_fallthru
        _
    $region12: #{residual_block_forward.2} parent=5 // pred_fallthru
      _
    %p227 = scmp.lt.s32.totalorder %s14, 2
    // Predicated region
    $region33: #{residual_block_forward.2} parent=5 // pred_check
      %p228 = pneg %p227
    $region34: #{residual_block_forward.2} parent=5 // pred_check_branch
      %230 = sbr.rel (%p228) target = $region36
    $region35: #{residual_block_forward.2} parent=5 // pred_region
      // Predicated region
      $region37: #{residual_block_forward.2} parent=35 // pred_check
        %p231 = pneg %p34
      $region38: #{residual_block_forward.2} parent=35 // pred_check_branch
        %233 = sbr.rel (%p231) target = $region40
      $region39: #{residual_block_forward.2} parent=35 // pred_region
        %p234 = scmp.lt.s32.totalorder %s14, 1
        %s235 = scalar_select %p234, %s14, 1
        %s236 = smul.addr %s235, 2
        %s237 = smul.addr %s236, 4
        %s238 = scalar_lea.vmem %s0, %s237
      $region40: #{residual_block_forward.2} parent=35 // pred_fallthru
        _
    $region36: #{residual_block_forward.2} parent=5 // pred_fallthru
      _
    %p239 = scmp.le.s32.totalorder 1, %s14
    %p240 = scmp.lt.s32.totalorder %s14, 3
    %p241 = pnand %p239, %p240
    %p242 = pneg %p241
    // Predicated region
    $region41: #{residual_block_forward.2} parent=5 // pred_check
      _
    $region42: #{residual_block_forward.2} parent=5 // pred_check_branch
      %244 = sbr.rel (%p241) target = $region44
    $region43: #{residual_block_forward.2} parent=5 // pred_region
      %s245 = ssub.s32 %s14, 1
      %p246 = scmp.lt.s32.totalorder %s19, 1
      %s247 = scalar_select %p246, %s19, 1
      %s248 = smul.addr %s247, 2
      %s249 = smul.addr %s248, 4
      %s250 = scalar_lea.vmem %s0, %s249
      %p251 = pneg %p40
      %p252 = pneg %p37
      %p253 = pneg %p61
      %p254 = pneg %p58
      %p255 = pneg %p82
      %p256 = pneg %p79
      %p257 = pneg %p103
      %p258 = pneg %p100
      %p259 = pneg %p124
      %p260 = pneg %p121
      %p261 = pneg %p145
      %p262 = pneg %p142
      %p263 = pneg %p171
      %p264 = pneg %p168
      %p265 = scmp.lt.s32.totalorder %s19, 1
      %s266 = scalar_select %p265, %s19, 1
      %s267 = smul.addr %s266, 2
      %s268 = smul.addr %s267, 8
      %s269 = scalar_lea.vmem %s6, %s268
      %p270 = pneg %p197
      %p271 = pneg %p194
      %p272 = scmp.lt.s32.totalorder %s19, 1
      %s273 = scalar_select %p272, %s19, 1
      %s274 = smul.addr %s273, 8
      %s275 = scalar_lea.vmem %s7, %s274
      %p276 = scmp.lt.s32.totalorder %s19, 1
      %s277 = scalar_select %p276, %s19, 1
      %s278 = smul.addr %s277, 2
      %s279 = smul.addr %s278, 4
      %s280 = scalar_lea.vmem %s0, %s279
      %p281 = scmp.lt.s32.totalorder %s19, 1
      %s282 = scalar_select %p281, %s19, 1
      %s283 = smul.addr %s282, 2
      %s284 = smul.addr %s283, 8
      %s285 = scalar_lea.vmem %s6, %s284
      %p286 = scmp.lt.s32.totalorder %s19, 1
      %s287 = scalar_select %p286, %s19, 1
      %s288 = smul.addr %s287, 8
      %s289 = scalar_lea.vmem %s7, %s288
      %v290 = vld [vmem:[%s5] sm:$0xff]
      %v291 = vld [vmem:[%s5 + $0x8] sm:$0xff]
      %v292 = vld [vmem:[%s5 + $0x10] sm:$0x1]
      %v293 = vld [vmem:[%s5 + $0x18] sm:$0x1]
      %v294 = vld [vmem:[%s280] sm:$0xff]
      %v295 = vld [vmem:[%s1] sm:$0xf]
      %297 = vset.pattern.permute.xlu0 0
      %298 = vperm.xlu0 %297, %v295
      %v299 = vpop.permute.xlu0 %298
      %v301 = vunpack.c.l.s4 839922192
      %v302 = vunpack.c.0.s8 %v301
      %v303 = vlaneseq
      %v304 = vshrl.u32 %v303, 7
      %v305 = vsub.s32 %v302, %v304
      %v306 = vrot.slane %v299, %v305
      %v308 = vmul.f32 %v294, %v306
      %v309 = vld [vmem:[%s2] sm:$0xf]
      %311 = vset.pattern.permute.xlu0 0
      %312 = vperm.xlu0 %311, %v309
      %v313 = vpop.permute.xlu0 %312
      %v315 = vunpack.c.l.s4 839922192
      %v316 = vunpack.c.0.s8 %v315
      %v317 = vlaneseq
      %v318 = vshrl.u32 %v317, 7
      %v319 = vsub.s32 %v316, %v318
      %v320 = vrot.slane %v313, %v319
      %v322 = vadd.f32 %v308, %v320
      %v323 = vmax.f32 %v322, 0.0
      %v325 = vcombine.high %v323, %v323
      %327 = vrot.lane.b32.xlu0 %v323, 17
      %v328 = vpop.permute.xlu0 %327
      %329 = vrot.lane.b32.xlu0 %v325, 17
      %v330 = vpop.permute.xlu0 %329
      %v331 = vlaneseq
      %v332 = vand.u32 %v331, 127
      %vm333 = vcmp.lt.s32.totalorder %v332, 17
      %v334 = vsel %vm333, %v328, %v330
      %v335 = vsel %vm333, %v330, %v328
      %v336 = vlaneseq
      %v337 = vshrl.u32 %v336, 7
      %v338 = vsub.s32 0, %v337
      %v339 = vrot.slane %v290, %v338
      %v340 = vlaneseq
      %v341 = vshrl.u32 %v340, 7
      %v342 = vsub.s32 0, %v341
      %v343 = vrot.slane %v291, %v342
      %v344 = vmul.f32 %v335, %v339
      %v345 = vmul.f32 %v334, %v343
      %346 = vst [vmem:[#allocation2] sm:$0xf] %v344
      %347 = vst [vmem:[#allocation2 + $0x8] sm:$0xf] %v345
      %348 = vrot.lane.b32.xlu0 %v323, 16
      %v349 = vpop.permute.xlu0 %348
      %350 = vrot.lane.b32.xlu0 %v325, 16
      %v351 = vpop.permute.xlu0 %350
      %vm352 = vcmp.lt.s32.totalorder %v332, 16
      %v353 = vsel %vm352, %v349, %v351
      %v354 = vsel %vm352, %v351, %v349
      %v355 = vlaneseq
      %v356 = vshrl.u32 %v355, 7
      %v357 = vsub.s32 1, %v356
      %v358 = vrot.slane %v290, %v357
      %v359 = vlaneseq
      %v360 = vshrl.u32 %v359, 7
      %v361 = vsub.s32 1, %v360
      %v362 = vrot.slane %v291, %v361
      %v363 = vmul.f32 %v354, %v358
      %v364 = vmul.f32 %v353, %v362
      %v367 = vrot.slane %v363, 4
      %v368 = vrot.slane %v364, 4
      %371 = vst [vmem:[#allocation2] sm:$0xf0] %v367
      %372 = vst [vmem:[#allocation2 + $0x8] sm:$0xf0] %v368
      %373 = vrot.lane.b32.xlu0 %v323, 15
      %v374 = vpop.permute.xlu0 %373
      %375 = vrot.lane.b32.xlu0 %v325, 15
      %v376 = vpop.permute.xlu0 %375
      %vm377 = vcmp.lt.s32.totalorder %v332, 15
      %v378 = vsel %vm377, %v374, %v376
      %v379 = vsel %vm377, %v376, %v374
      %v380 = vlaneseq
      %v381 = vshrl.u32 %v380, 7
      %v382 = vsub.s32 2, %v381
      %v383 = vrot.slane %v290, %v382
      %v384 = vlaneseq
      %v385 = vshrl.u32 %v384, 7
      %v386 = vsub.s32 2, %v385
      %v387 = vrot.slane %v291, %v386
      %v388 = vmul.f32 %v379, %v383
      %v389 = vmul.f32 %v378, %v387
      %390 = vst [vmem:[#allocation2 + $0x10] sm:$0xf] %v388
      %391 = vst [vmem:[#allocation2 + $0x18] sm:$0xf] %v389
      %392 = vrot.lane.b32.xlu0 %v323, 1
      %v393 = vpop.permute.xlu0 %392
      %394 = vrot.lane.b32.xlu0 %v325, 1
      %v395 = vpop.permute.xlu0 %394
      %vm396 = vcmp.lt.s32.totalorder %v332, 1
      %v397 = vsel %vm396, %v393, %v395
      %v398 = vsel %vm396, %v395, %v393
      %v399 = vlaneseq
      %v400 = vshrl.u32 %v399, 7
      %v401 = vsub.s32 3, %v400
      %v402 = vrot.slane %v290, %v401
      %v403 = vlaneseq
      %v404 = vshrl.u32 %v403, 7
      %v405 = vsub.s32 3, %v404
      %v406 = vrot.slane %v291, %v405
      %v407 = vmul.f32 %v398, %v402
      %v408 = vmul.f32 %v397, %v406
      %v411 = vrot.slane %v407, 4
      %v412 = vrot.slane %v408, 4
      %415 = vst [vmem:[#allocation2 + $0x10] sm:$0xf0] %v411
      %416 = vst [vmem:[#allocation2 + $0x18] sm:$0xf0] %v412
      %v417 = vlaneseq
      %v418 = vshrl.u32 %v417, 7
      %v419 = vsub.s32 4, %v418
      %v420 = vrot.slane %v290, %v419
      %v421 = vlaneseq
      %v422 = vshrl.u32 %v421, 7
      %v423 = vsub.s32 4, %v422
      %v424 = vrot.slane %v291, %v423
      %v427 = vcombine.low %v420, %v424
      %v429 = vmul.f32 %v323, %v427
      %v431 = vcombine.high %v429, %v429
      %433 = vst [vmem:[#allocation2 + $0x20] sm:$0xf] %v429
      %434 = vst [vmem:[#allocation2 + $0x28] sm:$0xf] %v431
      %435 = vrot.lane.b32.xlu0 %v323, 127
      %v436 = vpop.permute.xlu0 %435
      %437 = vrot.lane.b32.xlu0 %v325, 127
      %v438 = vpop.permute.xlu0 %437
      %vm439 = vcmp.lt.s32.totalorder %v332, 127
      %v440 = vsel %vm439, %v436, %v438
      %v441 = vsel %vm439, %v438, %v436
      %v442 = vlaneseq
      %v443 = vshrl.u32 %v442, 7
      %v444 = vsub.s32 5, %v443
      %v445 = vrot.slane %v290, %v444
      %v446 = vlaneseq
      %v447 = vshrl.u32 %v446, 7
      %v448 = vsub.s32 5, %v447
      %v449 = vrot.slane %v291, %v448
      %v450 = vmul.f32 %v440, %v445
      %v451 = vmul.f32 %v441, %v449
      %v454 = vrot.slane %v450, 4
      %v455 = vrot.slane %v451, 4
      %458 = vst [vmem:[#allocation2 + $0x20] sm:$0xf0] %v454
      %459 = vst [vmem:[#allocation2 + $0x28] sm:$0xf0] %v455
      %460 = vrot.lane.b32.xlu0 %v323, 113
      %v461 = vpop.permute.xlu0 %460
      %462 = vrot.lane.b32.xlu0 %v325, 113
      %v463 = vpop.permute.xlu0 %462
      %vm464 = vcmp.lt.s32.totalorder %v332, 113
      %v465 = vsel %vm464, %v461, %v463
      %v466 = vsel %vm464, %v463, %v461
      %v467 = vlaneseq
      %v468 = vshrl.u32 %v467, 7
      %v469 = vsub.s32 6, %v468
      %v470 = vrot.slane %v290, %v469
      %v471 = vlaneseq
      %v472 = vshrl.u32 %v471, 7
      %v473 = vsub.s32 6, %v472
      %v474 = vrot.slane %v291, %v473
      %v475 = vmul.f32 %v465, %v470
      %v476 = vmul.f32 %v466, %v474
      %477 = vst [vmem:[#allocation2 + $0x30] sm:$0xf] %v475
      %478 = vst [vmem:[#allocation2 + $0x38] sm:$0xf] %v476
      %479 = vrot.lane.b32.xlu0 %v323, 112
      %v480 = vpop.permute.xlu0 %479
      %481 = vrot.lane.b32.xlu0 %v325, 112
      %v482 = vpop.permute.xlu0 %481
      %vm483 = vcmp.lt.s32.totalorder %v332, 112
      %v484 = vsel %vm483, %v480, %v482
      %v485 = vsel %vm483, %v482, %v480
      %v486 = vlaneseq
      %v487 = vshrl.u32 %v486, 7
      %v488 = vsub.s32 7, %v487
      %v489 = vrot.slane %v290, %v488
      %v490 = vlaneseq
      %v491 = vshrl.u32 %v490, 7
      %v492 = vsub.s32 7, %v491
      %v493 = vrot.slane %v291, %v492
      %v494 = vmul.f32 %v484, %v489
      %v495 = vmul.f32 %v485, %v493
      %v498 = vrot.slane %v494, 4
      %v499 = vrot.slane %v495, 4
      %502 = vst [vmem:[#allocation2 + $0x30] sm:$0xf0] %v498
      %503 = vst [vmem:[#allocation2 + $0x38] sm:$0xf0] %v499
      %504 = vrot.lane.b32.xlu0 %v323, 111
      %v505 = vpop.permute.xlu0 %504
      %506 = vrot.lane.b32.xlu0 %v325, 111
      %v507 = vpop.permute.xlu0 %506
      %vm508 = vcmp.lt.s32.totalorder %v332, 111
      %v509 = vsel %vm508, %v505, %v507
      %v510 = vsel %vm508, %v507, %v505
      %v511 = vlaneseq
      %v512 = vshrl.u32 %v511, 7
      %v513 = vsub.s32 0, %v512
      %v514 = vrot.slane %v292, %v513
      %v515 = vlaneseq
      %v516 = vshrl.u32 %v515, 7
      %v517 = vsub.s32 0, %v516
      %v518 = vrot.slane %v293, %v517
      %v519 = vmul.f32 %v509, %v514
      %v520 = vmul.f32 %v510, %v518
      %521 = vst [vmem:[#allocation2 + $0x40] sm:$0xf] %v519
      %522 = vst [vmem:[#allocation2 + $0x48] sm:$0xf] %v520
      %v523 = vld [vmem:[%s3] sm:$0xff]
      %v524 = vld [vmem:[#allocation2] sm:$0xff]
      %v525 = vld [vmem:[#allocation2 + $0x8] sm:$0xff]
      %v526 = vld [vmem:[#allocation2 + $0x10] sm:$0xff]
      %v527 = vld [vmem:[#allocation2 + $0x18] sm:$0xff]
      %v528 = vld [vmem:[#allocation2 + $0x20] sm:$0xff]
      %v529 = vld [vmem:[#allocation2 + $0x28] sm:$0xff]
      %v530 = vld [vmem:[#allocation2 + $0x30] sm:$0xff]
      %v531 = vld [vmem:[#allocation2 + $0x38] sm:$0xff]
      %v532 = vld [vmem:[#allocation2 + $0x40] sm:$0xf]
      %v533 = vld [vmem:[#allocation2 + $0x48] sm:$0xf]
      %v534 = vld [vmem:[%s4] sm:$0xff]
      %536 = vset.pattern.permute.xlu0 0
      %537 = vperm.xlu0 %536, %v534
      %v538 = vpop.permute.xlu0 %537
      %vm540 = vcmask 293888
      %v542 = vsel %vm540, %v523, 0
      %vm544 = vcmask 1043456
      %v546 = vsel %vm544, %v532, 0
      %v549 = vsel %vm544, %v533, 0
      %551 = vmatprep.subr.mxu0 0.0
      %552 = vmatpush1.msra.mxu0 0.0
      %553 = vmatprep.subr.mxu0 0.0
      %554 = vmatpush1.msra.mxu0 0.0
      %555 = vmatprep.subr.mxu0 0.0
      %556 = vmatpush1.msra.mxu0 0.0
      %557 = vmatprep.subr.mxu0 0.0
      %558 = vmatpush1.msra.mxu0 0.0
      %559 = vmatprep.subr.mxu0 0.0
      %560 = vmatpush1.msra.mxu0 0.0
      %561 = vmatprep.subr.mxu0 0.0
      %562 = vmatpush1.msra.mxu0 0.0
      %563 = vmatprep.subr.mxu0 0.0
      %564 = vmatpush1.msra.mxu0 0.0
      %565 = vmatprep.subr.mxu0 0.0
      %566 = vmatpush1.msra.mxu0 0.0
      %567 = vmatprep.subr.mxu0 0.0
      %568 = vmatpush1.msra.mxu0 0.0
      %569 = vmatprep.subr.mxu0 0.0
      %570 = vmatpush1.msra.mxu0 0.0
      %571 = vmatprep.subr.mxu0 0.0
      %572 = vmatpush1.msra.mxu0 0.0
      %573 = vmatprep.subr.mxu0 %v549
      %574 = vmatpush1.msra.mxu0 %v546
      %575 = vmatprep.subr.mxu0 %v531
      %576 = vmatpush1.msra.mxu0 %v530
      %577 = vmatprep.subr.mxu0 %v529
      %578 = vmatpush1.msra.mxu0 %v528
      %579 = vmatprep.subr.mxu0 %v527
      %580 = vmatpush1.msra.mxu0 %v526
      %581 = vmatprep.subr.mxu0 %v525
      %582 = vmatpush1.msra.mxu0 %v524
      %583 = vmatprep.subr.mxu0 0.0
      %584 = vmatpush2.msra.mxu0 0.0
      %585 = vmatprep.subr.mxu0 0.0
      %586 = vmatpush2.msra.mxu0 0.0
      %587 = vmatprep.subr.mxu0 0.0
      %588 = vmatpush2.msra.mxu0 0.0
      %589 = vmatprep.subr.mxu0 0.0
      %590 = vmatpush2.msra.mxu0 0.0
      %591 = vmatprep.subr.mxu0 0.0
      %592 = vmatpush2.msra.mxu0 0.0
      %593 = vmatprep.subr.mxu0 0.0
      %594 = vmatpush2.msra.mxu0 0.0
      %595 = vmatprep.subr.mxu0 0.0
      %596 = vmatpush2.msra.mxu0 0.0
      %597 = vmatprep.subr.mxu0 0.0
      %598 = vmatpush2.msra.mxu0 0.0
      %599 = vmatprep.subr.mxu0 0.0
      %600 = vmatpush2.msra.mxu0 0.0
      %601 = vmatprep.subr.mxu0 0.0
      %602 = vmatpush2.msra.mxu0 0.0
      %603 = vmatprep.subr.mxu0 0.0
      %604 = vmatpush2.msra.mxu0 0.0
      %605 = vmatprep.subr.mxu0 0.0
      %606 = vmatpush2.msra.mxu0 0.0
      %607 = vmatprep.subr.mxu0 0.0
      %608 = vmatpush2.msra.mxu0 0.0
      %609 = vmatprep.subr.mxu0 0.0
      %610 = vmatpush2.msra.mxu0 0.0
      %611 = vmatprep.subr.mxu0 0.0
      %612 = vmatpush2.msra.mxu0 0.0
      %613 = vmatprep.subr.mxu0 0.0
      %614 = vmatpush2.msra.mxu0 0.0
      %615 = vmatprep.mubr.f32.mxu0 0.0
      %616 = vmatmul.mubr.f32.gmra.mxu0 %v542
      %v617 = vpop.f32.mrf.mxu0
      %v618 = vadd.f32 %v538, %v617
      %v619 = vpop.f32.mrf.mxu0
      %v620 = vadd.f32 %v538, %v619
      %621 = vdwg.mxu0
      %622 = vst [vmem:[%s285] sm:$0xff] %v618
      %623 = vst [vmem:[%s285 + $0x8] sm:$0xff] %v620
      %v624 = vadd.f32 %v618, %v620
      %625 = vadd.xlane.f32.xlu0 %v624
      %v626 = vpop.xlane.xlu0 %625
      %v627 = vmul.f32 %v618, %v618
      %v628 = vmul.f32 %v620, %v620
      %v629 = vadd.f32 %v627, %v628
      %630 = vadd.xlane.f32.xlu0 %v629
      %v631 = vpop.xlane.xlu0 %630
      %vm632 = vcmask 7168
      %v633 = vsel %vm632, %v626, %v631
      %vm634 = vcmask 15360
      %635 = vst.msk [vmem:[%s289] sm:$0xff] %vm634, %v633
      %p636 = scmp.lt.s32.totalorder %s19, 1
      %s637 = scalar_select %p636, %s19, 1
      %s638 = smul.addr %s637, 2
      %s639 = smul.addr %s638, 8
      %s640 = scalar_lea.vmem %s6, %s639
      %p641 = scmp.lt.s32.totalorder %s19, 1
      %s642 = scalar_select %p641, %s19, 1
      %s643 = smul.addr %s642, 8
      %s644 = scalar_lea.vmem %s7, %s643
      // Predicated region
      $region45: #{residual_block_forward.2} parent=43 // pred_check
        %p645 = pneg %p168
      $region46: #{residual_block_forward.2} parent=43 // pred_check_branch
        %647 = sbr.rel (%p645) target = $region48
      $region47: #{residual_block_forward.2} parent=43 // pred_region
        _
      $region48: #{residual_block_forward.2} parent=43 // pred_fallthru
        _
      // Predicated region
      $region49: #{residual_block_forward.2} parent=43 // pred_check
        %p648 = pneg %p194
      $region50: #{residual_block_forward.2} parent=43 // pred_check_branch
        %650 = sbr.rel (%p648) target = $region52
      $region51: #{residual_block_forward.2} parent=43 // pred_region
        _
      $region52: #{residual_block_forward.2} parent=43 // pred_fallthru
        _
    $region44: #{residual_block_forward.2} parent=5 // pred_fallthru
      _
    %p651 = scmp.le.s32.totalorder 2, %s14
    // Predicated region
    $region53: #{residual_block_forward.2} parent=5 // pred_check
      %p652 = pneg %p651
    $region54: #{residual_block_forward.2} parent=5 // pred_check_branch
      %654 = sbr.rel (%p652) target = $region56
    $region55: #{residual_block_forward.2} parent=5 // pred_region
      %s655 = ssub.s32 %s14, 2
      // Predicated region
      $region57: #{residual_block_forward.2} parent=55 // pred_check
        %p656 = pneg %p174
      $region58: #{residual_block_forward.2} parent=55 // pred_check_branch
        %658 = sbr.rel (%p656) target = $region60
      $region59: #{residual_block_forward.2} parent=55 // pred_region
        %p659 = scmp.lt.s32.totalorder %s20, 1
        %s660 = scalar_select %p659, %s20, 1
        %s661 = smul.addr %s660, 2
        %s662 = smul.addr %s661, 8
        %s663 = scalar_lea.vmem %s6, %s662
      $region60: #{residual_block_forward.2} parent=55 // pred_fallthru
        _
      // Predicated region
      $region61: #{residual_block_forward.2} parent=55 // pred_check
        %p664 = pneg %p200
      $region62: #{residual_block_forward.2} parent=55 // pred_check_branch
        %666 = sbr.rel (%p664) target = $region64
      $region63: #{residual_block_forward.2} parent=55 // pred_region
        %p667 = scmp.lt.s32.totalorder %s20, 1
        %s668 = scalar_select %p667, %s20, 1
        %s669 = smul.addr %s668, 8
        %s670 = scalar_lea.vmem %s7, %s669
      $region64: #{residual_block_forward.2} parent=55 // pred_fallthru
        _
    $region56: #{residual_block_forward.2} parent=5 // pred_fallthru
      _
  $region6: #{residual_block_forward.2} parent=0 // loop_footer
    %s18 = sadd.s32 1, %s14
  $region7: #{residual_block_forward.2} parent=0 // loop_footer_branch
    %13 = sbr.rel target = $region3
  $region8: #{residual_block_forward.2} parent=0 // loop_exit
    _

// kernel: residual_block_forward.3
$region0: #{residual_block_forward.3}
  #allocation0 [shape = 'u32[]', space=smem, size = 0x4, offset = 0x4, fixed_abs, tag = 'smem constant byte address 0x4 - core index']
  #allocation1 [shape = 'u32[144,128]{1,0:T(1,128)}', space=vmem, size = 0x12000, scoped, tag = 'internal scratch']
  #allocation2 [shape = 'f32[108,256]{1,0:T(8,128)}', space=vmem, size = 0x1c000, scoped, tag = 'scratch operand']
  %s0 = inlined_call_operand.vmem [shape: f32[2,8,256], index: 0, kind: input, shape index: {}]
  %s1 = inlined_call_operand.vmem [shape: f32[2,4,256], index: 1, kind: input, shape index: {}]
  %s2 = inlined_call_operand.vmem [shape: f32[8,1], index: 2, kind: input, shape index: {}]
  %s3 = inlined_call_operand.vmem [shape: f32[8,1], index: 3, kind: input, shape index: {}]
  %s4 = inlined_call_operand.vmem [shape: f32[8,108], index: 4, kind: input, shape index: {}]
  %s5 = inlined_call_operand.vmem [shape: f32[8,1], index: 5, kind: input, shape index: {}]
  %s6 = inlined_call_operand.vmem [shape: f32[9,256], index: 6, kind: input, shape index: {}]
  %s7 = inlined_call_operand.vmem [shape: f32[2,8,256], index: 7, kind: output, shape index: {}]
  %s8 = sld [smem:[#allocation0]]
  $region61: #{residual_block_forward.3} parent=0
    _
  %s10 = ssub.s32 1, %s8
  %s11 = scalar_select 0, %s10, %s8
  loop: start=0, step=1, limit=4
  $region2: #{residual_block_forward.3} parent=0 // loop_pre_header
    _
  $region3: #{residual_block_forward.3} parent=0 // loop_header
    %s13 = sphi 0, %s17
    %p14 = scmp.ge.s32.totalorder %s13, 4
    %s23 = sphi 0, %s25
    %s26 = sphi 0, %s23
    %s27 = sphi 0, %s26
    %s43 = sphi 0, %s27
    %s49 = sphi 0, %s51
    %s52 = sphi 0, %s49
    %s53 = sphi 0, %s52
    %s69 = sphi 0, %s53
    %s73 = sphi 0, %s73
    %s75 = sphi 0, %s73
    %s76 = sphi 0, %s75
    %s90 = sphi 0, %s76
    %s94 = sphi 0, %s94
    %s96 = sphi 0, %s94
    %s97 = sphi 0, %s96
    %s111 = sphi 0, %s97
    %s115 = sphi 0, %s115
    %s117 = sphi 0, %s115
    %s118 = sphi 0, %s117
    %s132 = sphi 0, %s118
    %s136 = sphi 0, %s136
    %s138 = sphi 0, %s136
    %s139 = sphi 0, %s138
    %s153 = sphi 0, %s139
    %s157 = sphi 0, %s157
    %s159 = sphi 0, %s157
    %s160 = sphi 0, %s159
    %s174 = sphi 0, %s160
    %s180 = sphi 0, %s182
    %s183 = sphi 0, %s180
    %s184 = sphi 0, %s183
    %s200 = sphi 0, %s184
  $region4: #{residual_block_forward.3} parent=0 // loop_header_branch
    %16 = sbr.rel (%p14) target = $region8
  $region5: #{residual_block_forward.3} parent=0 // loop_body
    %s18 = ssub.s32 %s13, 1
    %s19 = ssub.s32 %s13, 2
    %s20 = sadd.s32 %s13, 1
    %s21 = ssub.s32 %s13, %s20
    %p22 = scmp.eq.s32.totalorder %s21, 0
    %s24 = sadd.s32 %s23, 1
    %s25 = scalar_select %p22, %s23, %s24
    %p28 = pneg %p22
    %p29 = scmp.eq.s32.totalorder %s13, 1
    %p30 = por %p28, %p29
    %p31 = scmp.ne.s32.totalorder %s23, %s26
    %p32 = scmp.eq.s32.totalorder %s13, 0
    %p33 = por %p31, %p32
    %p34 = scmp.ne.s32.totalorder %s23, %s26
    %p35 = scmp.eq.s32.totalorder %s18, 1
    %p36 = por %p34, %p35
    %p37 = scmp.ne.s32.totalorder %s26, %s27
    %p38 = scmp.eq.s32.totalorder %s18, 0
    %p39 = por %p37, %p38
    %p40 = scmp.ne.s32.totalorder %s26, %s27
    %p41 = scmp.eq.s32.totalorder %s19, 1
    %p42 = por %p40, %p41
    %p44 = scmp.ne.s32.totalorder %s27, %s43
    %p45 = scmp.eq.s32.totalorder %s19, 0
    %p46 = por %p44, %p45
    %s47 = ssub.s32 %s13, %s20
    %p48 = scmp.eq.s32.totalorder %s47, 0
    %s50 = sadd.s32 %s49, 1
    %s51 = scalar_select %p48, %s49, %s50
    %p54 = pneg %p48
    %p55 = scmp.eq.s32.totalorder %s13, 1
    %p56 = por %p54, %p55
    %p57 = scmp.ne.s32.totalorder %s49, %s52
    %p58 = scmp.eq.s32.totalorder %s13, 0
    %p59 = por %p57, %p58
    %p60 = scmp.ne.s32.totalorder %s49, %s52
    %p61 = scmp.eq.s32.totalorder %s18, 1
    %p62 = por %p60, %p61
    %p63 = scmp.ne.s32.totalorder %s52, %s53
    %p64 = scmp.eq.s32.totalorder %s18, 0
    %p65 = por %p63, %p64
    %p66 = scmp.ne.s32.totalorder %s52, %s53
    %p67 = scmp.eq.s32.totalorder %s19, 1
    %p68 = por %p66, %p67
    %p70 = scmp.ne.s32.totalorder %s53, %s69
    %p71 = scmp.eq.s32.totalorder %s19, 0
    %p72 = por %p70, %p71
    %s74 = sadd.s32 %s73, 1
    %p77 = scmp.eq.s32.totalorder %s13, 1
    %p78 = scmp.ne.s32.totalorder %s73, %s75
    %p79 = scmp.eq.s32.totalorder %s13, 0
    %p80 = por %p78, %p79
    %p81 = scmp.ne.s32.totalorder %s73, %s75
    %p82 = scmp.eq.s32.totalorder %s18, 1
    %p83 = por %p81, %p82
    %p84 = scmp.ne.s32.totalorder %s75, %s76
    %p85 = scmp.eq.s32.totalorder %s18, 0
    %p86 = por %p84, %p85
    %p87 = scmp.ne.s32.totalorder %s75, %s76
    %p88 = scmp.eq.s32.totalorder %s19, 1
    %p89 = por %p87, %p88
    %p91 = scmp.ne.s32.totalorder %s76, %s90
    %p92 = scmp.eq.s32.totalorder %s19, 0
    %p93 = por %p91, %p92
    %s95 = sadd.s32 %s94, 1
    %p98 = scmp.eq.s32.totalorder %s13, 1
    %p99 = scmp.ne.s32.totalorder %s94, %s96
    %p100 = scmp.eq.s32.totalorder %s13, 0
    %p101 = por %p99, %p100
    %p102 = scmp.ne.s32.totalorder %s94, %s96
    %p103 = scmp.eq.s32.totalorder %s18, 1
    %p104 = por %p102, %p103
    %p105 = scmp.ne.s32.totalorder %s96, %s97
    %p106 = scmp.eq.s32.totalorder %s18, 0
    %p107 = por %p105, %p106
    %p108 = scmp.ne.s32.totalorder %s96, %s97
    %p109 = scmp.eq.s32.totalorder %s19, 1
    %p110 = por %p108, %p109
    %p112 = scmp.ne.s32.totalorder %s97, %s111
    %p113 = scmp.eq.s32.totalorder %s19, 0
    %p114 = por %p112, %p113
    %s116 = sadd.s32 %s115, 1
    %p119 = scmp.eq.s32.totalorder %s13, 1
    %p120 = scmp.ne.s32.totalorder %s115, %s117
    %p121 = scmp.eq.s32.totalorder %s13, 0
    %p122 = por %p120, %p121
    %p123 = scmp.ne.s32.totalorder %s115, %s117
    %p124 = scmp.eq.s32.totalorder %s18, 1
    %p125 = por %p123, %p124
    %p126 = scmp.ne.s32.totalorder %s117, %s118
    %p127 = scmp.eq.s32.totalorder %s18, 0
    %p128 = por %p126, %p127
    %p129 = scmp.ne.s32.totalorder %s117, %s118
    %p130 = scmp.eq.s32.totalorder %s19, 1
    %p131 = por %p129, %p130
    %p133 = scmp.ne.s32.totalorder %s118, %s132
    %p134 = scmp.eq.s32.totalorder %s19, 0
    %p135 = por %p133, %p134
    %s137 = sadd.s32 %s136, 1
    %p140 = scmp.eq.s32.totalorder %s13, 1
    %p141 = scmp.ne.s32.totalorder %s136, %s138
    %p142 = scmp.eq.s32.totalorder %s13, 0
    %p143 = por %p141, %p142
    %p144 = scmp.ne.s32.totalorder %s136, %s138
    %p145 = scmp.eq.s32.totalorder %s18, 1
    %p146 = por %p144, %p145
    %p147 = scmp.ne.s32.totalorder %s138, %s139
    %p148 = scmp.eq.s32.totalorder %s18, 0
    %p149 = por %p147, %p148
    %p150 = scmp.ne.s32.totalorder %s138, %s139
    %p151 = scmp.eq.s32.totalorder %s19, 1
    %p152 = por %p150, %p151
    %p154 = scmp.ne.s32.totalorder %s139, %s153
    %p155 = scmp.eq.s32.totalorder %s19, 0
    %p156 = por %p154, %p155
    %s158 = sadd.s32 %s157, 1
    %p161 = scmp.eq.s32.totalorder %s13, 1
    %p162 = scmp.ne.s32.totalorder %s157, %s159
    %p163 = scmp.eq.s32.totalorder %s13, 0
    %p164 = por %p162, %p163
    %p165 = scmp.ne.s32.totalorder %s157, %s159
    %p166 = scmp.eq.s32.totalorder %s18, 1
    %p167 = por %p165, %p166
    %p168 = scmp.ne.s32.totalorder %s159, %s160
    %p169 = scmp.eq.s32.totalorder %s18, 0
    %p170 = por %p168, %p169
    %p171 = scmp.ne.s32.totalorder %s159, %s160
    %p172 = scmp.eq.s32.totalorder %s19, 1
    %p173 = por %p171, %p172
    %p175 = scmp.ne.s32.totalorder %s160, %s174
    %p176 = scmp.eq.s32.totalorder %s19, 0
    %p177 = por %p175, %p176
    %s178 = ssub.s32 %s13, %s20
    %p179 = scmp.eq.s32.totalorder %s178, 0
    %s181 = sadd.s32 %s180, 1
    %s182 = scalar_select %p179, %s180, %s181
    %p185 = pneg %p179
    %p186 = scmp.eq.s32.totalorder %s13, 1
    %p187 = por %p185, %p186
    %p188 = scmp.ne.s32.totalorder %s180, %s183
    %p189 = scmp.eq.s32.totalorder %s13, 0
    %p190 = por %p188, %p189
    %p191 = scmp.ne.s32.totalorder %s180, %s183
    %p192 = scmp.eq.s32.totalorder %s18, 1
    %p193 = por %p191, %p192
    %p194 = scmp.ne.s32.totalorder %s183, %s184
    %p195 = scmp.eq.s32.totalorder %s18, 0
    %p196 = por %p194, %p195
    %p197 = scmp.ne.s32.totalorder %s183, %s184
    %p198 = scmp.eq.s32.totalorder %s19, 1
    %p199 = por %p197, %p198
    %p201 = scmp.ne.s32.totalorder %s184, %s200
    %p202 = scmp.eq.s32.totalorder %s19, 0
    %p203 = por %p201, %p202
    %p204 = scmp.le.s32.totalorder 1, %s13
    %p205 = scmp.lt.s32.totalorder %s13, 3
    %p206 = pnand %p204, %p205
    %p207 = pneg %p206
    // Predicated region
    $region9: #{residual_block_forward.3} parent=5 // pred_check
      _
    $region10: #{residual_block_forward.3} parent=5 // pred_check_branch
      %209 = sbr.rel (%p206) target = $region12
    $region11: #{residual_block_forward.3} parent=5 // pred_region
      %s210 = ssub.s32 %s13, 1
      // Predicated region
      $region13: #{residual_block_forward.3} parent=11 // pred_check
        %p211 = pneg %p86
      $region14: #{residual_block_forward.3} parent=11 // pred_check_branch
        %213 = sbr.rel (%p211) target = $region16
      $region15: #{residual_block_forward.3} parent=11 // pred_region
        _
      $region16: #{residual_block_forward.3} parent=11 // pred_fallthru
        _
      // Predicated region
      $region17: #{residual_block_forward.3} parent=11 // pred_check
        %p214 = pneg %p107
      $region18: #{residual_block_forward.3} parent=11 // pred_check_branch
        %216 = sbr.rel (%p214) target = $region20
      $region19: #{residual_block_forward.3} parent=11 // pred_region
        _
      $region20: #{residual_block_forward.3} parent=11 // pred_fallthru
        _
      // Predicated region
      $region21: #{residual_block_forward.3} parent=11 // pred_check
        %p217 = pneg %p128
      $region22: #{residual_block_forward.3} parent=11 // pred_check_branch
        %219 = sbr.rel (%p217) target = $region24
      $region23: #{residual_block_forward.3} parent=11 // pred_region
        _
      $region24: #{residual_block_forward.3} parent=11 // pred_fallthru
        _
      // Predicated region
      $region25: #{residual_block_forward.3} parent=11 // pred_check
        %p220 = pneg %p149
      $region26: #{residual_block_forward.3} parent=11 // pred_check_branch
        %222 = sbr.rel (%p220) target = $region28
      $region27: #{residual_block_forward.3} parent=11 // pred_region
        _
      $region28: #{residual_block_forward.3} parent=11 // pred_fallthru
        _
      // Predicated region
      $region29: #{residual_block_forward.3} parent=11 // pred_check
        %p223 = pneg %p170
      $region30: #{residual_block_forward.3} parent=11 // pred_check_branch
        %225 = sbr.rel (%p223) target = $region32
      $region31: #{residual_block_forward.3} parent=11 // pred_region
        _
      $region32: #{residual_block_forward.3} parent=11 // pred_fallthru
        _
    $region12: #{residual_block_forward.3} parent=5 // pred_fallthru
      _
    %p226 = scmp.lt.s32.totalorder %s13, 2
    // Predicated region
    $region33: #{residual_block_forward.3} parent=5 // pred_check
      %p227 = pneg %p226
    $region34: #{residual_block_forward.3} parent=5 // pred_check_branch
      %229 = sbr.rel (%p227) target = $region36
    $region35: #{residual_block_forward.3} parent=5 // pred_region
      // Predicated region
      $region37: #{residual_block_forward.3} parent=35 // pred_check
        %p230 = pneg %p33
      $region38: #{residual_block_forward.3} parent=35 // pred_check_branch
        %232 = sbr.rel (%p230) target = $region40
      $region39: #{residual_block_forward.3} parent=35 // pred_region
        %p233 = scmp.lt.s32.totalorder %s13, 1
        %s234 = scalar_select %p233, %s13, 1
        %s235 = smul.addr %s234, 2
        %s236 = smul.addr %s235, 8
        %s237 = scalar_lea.vmem %s0, %s236
      $region40: #{residual_block_forward.3} parent=35 // pred_fallthru
        _
      // Predicated region
      $region41: #{residual_block_forward.3} parent=35 // pred_check
        %p238 = pneg %p59
      $region42: #{residual_block_forward.3} parent=35 // pred_check_branch
        %240 = sbr.rel (%p238) target = $region44
      $region43: #{residual_block_forward.3} parent=35 // pred_region
        %p241 = scmp.lt.s32.totalorder %s13, 1
        %s242 = scalar_select %p241, %s13, 1
        %s243 = smul.addr %s242, 2
        %s244 = smul.addr %s243, 4
        %s245 = scalar_lea.vmem %s1, %s244
      $region44: #{residual_block_forward.3} parent=35 // pred_fallthru
        _
    $region36: #{residual_block_forward.3} parent=5 // pred_fallthru
      _
    %p246 = scmp.le.s32.totalorder 1, %s13
    %p247 = scmp.lt.s32.totalorder %s13, 3
    %p248 = pnand %p246, %p247
    %p249 = pneg %p248
    // Predicated region
    $region45: #{residual_block_forward.3} parent=5 // pred_check
      _
    $region46: #{residual_block_forward.3} parent=5 // pred_check_branch
      %251 = sbr.rel (%p248) target = $region48
    $region47: #{residual_block_forward.3} parent=5 // pred_region
      %s252 = ssub.s32 %s13, 1
      %p253 = scmp.lt.s32.totalorder %s18, 1
      %s254 = scalar_select %p253, %s18, 1
      %s255 = smul.addr %s254, 2
      %s256 = smul.addr %s255, 8
      %s257 = scalar_lea.vmem %s0, %s256
      %p258 = pneg %p39
      %p259 = pneg %p36
      %p260 = scmp.lt.s32.totalorder %s18, 1
      %s261 = scalar_select %p260, %s18, 1
      %s262 = smul.addr %s261, 2
      %s263 = smul.addr %s262, 4
      %s264 = scalar_lea.vmem %s1, %s263
      %p265 = pneg %p65
      %p266 = pneg %p62
      %p267 = pneg %p86
      %p268 = pneg %p83
      %p269 = pneg %p107
      %p270 = pneg %p104
      %p271 = pneg %p128
      %p272 = pneg %p125
      %p273 = pneg %p149
      %p274 = pneg %p146
      %p275 = pneg %p170
      %p276 = pneg %p167
      %p277 = pneg %p196
      %p278 = pneg %p193
      %p279 = scmp.lt.s32.totalorder %s18, 1
      %s280 = scalar_select %p279, %s18, 1
      %s281 = smul.addr %s280, 2
      %s282 = smul.addr %s281, 8
      %s283 = scalar_lea.vmem %s7, %s282
      %p284 = scmp.lt.s32.totalorder %s18, 1
      %s285 = scalar_select %p284, %s18, 1
      %s286 = smul.addr %s285, 2
      %s287 = smul.addr %s286, 8
      %s288 = scalar_lea.vmem %s0, %s287
      %p289 = scmp.lt.s32.totalorder %s18, 1
      %s290 = scalar_select %p289, %s18, 1
      %s291 = smul.addr %s290, 2
      %s292 = smul.addr %s291, 4
      %s293 = scalar_lea.vmem %s1, %s292
      %p294 = scmp.lt.s32.totalorder %s18, 1
      %s295 = scalar_select %p294, %s18, 1
      %s296 = smul.addr %s295, 2
      %s297 = smul.addr %s296, 8
      %s298 = scalar_lea.vmem %s7, %s297
      %v299 = vld [vmem:[%s6] sm:$0xff]
      %v300 = vld [vmem:[%s6 + $0x8] sm:$0xff]
      %v301 = vld [vmem:[%s6 + $0x10] sm:$0x1]
      %v302 = vld [vmem:[%s6 + $0x18] sm:$0x1]
      %v303 = vld [vmem:[%s288] sm:$0xff]
      %v304 = vld [vmem:[%s288 + $0x8] sm:$0xff]
      %v305 = vld [vmem:[%s2] sm:$0xff]
      %307 = vset.pattern.permute.xlu0 0
      %308 = vperm.xlu0 %307, %v305
      %v309 = vpop.permute.xlu0 %308
      %v311 = vmul.f32 %v303, %v309
      %v312 = vmul.f32 %v304, %v309
      %v313 = vld [vmem:[%s3] sm:$0xff]
      %315 = vset.pattern.permute.xlu0 0
      %316 = vperm.xlu0 %315, %v313
      %v317 = vpop.permute.xlu0 %316
      %v319 = vadd.f32 %v311, %v317
      %v320 = vadd.f32 %v312, %v317
      %v321 = vmax.f32 %v319, 0.0
      %v322 = vmax.f32 %v320, 0.0
      %323 = vrot.lane.b32.xlu0 %v321, 17
      %v324 = vpop.permute.xlu0 %323
      %325 = vrot.lane.b32.xlu0 %v322, 17
      %v326 = vpop.permute.xlu0 %325
      %v327 = vlaneseq
      %v328 = vand.u32 %v327, 127
      %vm329 = vcmp.lt.s32.totalorder %v328, 17
      %v330 = vsel %vm329, %v324, %v326
      %v331 = vsel %vm329, %v326, %v324
      %v332 = vlaneseq
      %v333 = vshrl.u32 %v332, 7
      %v334 = vsub.s32 0, %v333
      %v335 = vrot.slane %v299, %v334
      %v336 = vlaneseq
      %v337 = vshrl.u32 %v336, 7
      %v338 = vsub.s32 0, %v337
      %v339 = vrot.slane %v300, %v338
      %v340 = vmul.f32 %v331, %v335
      %v341 = vmul.f32 %v330, %v339
      %342 = vst [vmem:[#allocation2] sm:$0xff] %v340
      %343 = vst [vmem:[#allocation2 + $0x8] sm:$0xff] %v341
      %344 = vrot.lane.b32.xlu0 %v321, 16
      %v345 = vpop.permute.xlu0 %344
      %346 = vrot.lane.b32.xlu0 %v322, 16
      %v347 = vpop.permute.xlu0 %346
      %vm348 = vcmp.lt.s32.totalorder %v328, 16
      %v349 = vsel %vm348, %v345, %v347
      %v350 = vsel %vm348, %v347, %v345
      %v351 = vlaneseq
      %v352 = vshrl.u32 %v351, 7
      %v353 = vsub.s32 1, %v352
      %v354 = vrot.slane %v299, %v353
      %v355 = vlaneseq
      %v356 = vshrl.u32 %v355, 7
      %v357 = vsub.s32 1, %v356
      %v358 = vrot.slane %v300, %v357
      %v359 = vmul.f32 %v350, %v354
      %v360 = vmul.f32 %v349, %v358
      %361 = vst [vmem:[#allocation2 + $0x10] sm:$0xff] %v359
      %362 = vst [vmem:[#allocation2 + $0x18] sm:$0xff] %v360
      %363 = vrot.lane.b32.xlu0 %v321, 15
      %v364 = vpop.permute.xlu0 %363
      %365 = vrot.lane.b32.xlu0 %v322, 15
      %v366 = vpop.permute.xlu0 %365
      %vm367 = vcmp.lt.s32.totalorder %v328, 15
      %v368 = vsel %vm367, %v364, %v366
      %v369 = vsel %vm367, %v366, %v364
      %v370 = vlaneseq
      %v371 = vshrl.u32 %v370, 7
      %v372 = vsub.s32 2, %v371
      %v373 = vrot.slane %v299, %v372
      %v374 = vlaneseq
      %v375 = vshrl.u32 %v374, 7
      %v376 = vsub.s32 2, %v375
      %v377 = vrot.slane %v300, %v376
      %v378 = vmul.f32 %v369, %v373
      %v379 = vmul.f32 %v368, %v377
      %380 = vst [vmem:[#allocation2 + $0x20] sm:$0xff] %v378
      %381 = vst [vmem:[#allocation2 + $0x28] sm:$0xff] %v379
      %382 = vrot.lane.b32.xlu0 %v321, 1
      %v383 = vpop.permute.xlu0 %382
      %384 = vrot.lane.b32.xlu0 %v322, 1
      %v385 = vpop.permute.xlu0 %384
      %vm386 = vcmp.lt.s32.totalorder %v328, 1
      %v387 = vsel %vm386, %v383, %v385
      %v388 = vsel %vm386, %v385, %v383
      %v389 = vlaneseq
      %v390 = vshrl.u32 %v389, 7
      %v391 = vsub.s32 3, %v390
      %v392 = vrot.slane %v299, %v391
      %v393 = vlaneseq
      %v394 = vshrl.u32 %v393, 7
      %v395 = vsub.s32 3, %v394
      %v396 = vrot.slane %v300, %v395
      %v397 = vmul.f32 %v388, %v392
      %v398 = vmul.f32 %v387, %v396
      %399 = vst [vmem:[#allocation2 + $0x30] sm:$0xff] %v397
      %400 = vst [vmem:[#allocation2 + $0x38] sm:$0xff] %v398
      %v401 = vlaneseq
      %v402 = vshrl.u32 %v401, 7
      %v403 = vsub.s32 4, %v402
      %v404 = vrot.slane %v299, %v403
      %v405 = vlaneseq
      %v406 = vshrl.u32 %v405, 7
      %v407 = vsub.s32 4, %v406
      %v408 = vrot.slane %v300, %v407
      %v409 = vmul.f32 %v321, %v404
      %v410 = vmul.f32 %v322, %v408
      %411 = vst [vmem:[#allocation2 + $0x40] sm:$0xff] %v409
      %412 = vst [vmem:[#allocation2 + $0x48] sm:$0xff] %v410
      %413 = vrot.lane.b32.xlu0 %v321, 127
      %v414 = vpop.permute.xlu0 %413
      %415 = vrot.lane.b32.xlu0 %v322, 127
      %v416 = vpop.permute.xlu0 %415
      %vm417 = vcmp.lt.s32.totalorder %v328, 127
      %v418 = vsel %vm417, %v414, %v416
      %v419 = vsel %vm417, %v416, %v414
      %v420 = vlaneseq
      %v421 = vshrl.u32 %v420, 7
      %v422 = vsub.s32 5, %v421
      %v423 = vrot.slane %v299, %v422
      %v424 = vlaneseq
      %v425 = vshrl.u32 %v424, 7
      %v426 = vsub.s32 5, %v425
      %v427 = vrot.slane %v300, %v426
      %v428 = vmul.f32 %v418, %v423
      %v429 = vmul.f32 %v419, %v427
      %430 = vst [vmem:[#allocation2 + $0x50] sm:$0xff] %v428
      %431 = vst [vmem:[#allocation2 + $0x58] sm:$0xff] %v429
      %432 = vrot.lane.b32.xlu0 %v321, 113
      %v433 = vpop.permute.xlu0 %432
      %434 = vrot.lane.b32.xlu0 %v322, 113
      %v435 = vpop.permute.xlu0 %434
      %vm436 = vcmp.lt.s32.totalorder %v328, 113
      %v437 = vsel %vm436, %v433, %v435
      %v438 = vsel %vm436, %v435, %v433
      %v439 = vlaneseq
      %v440 = vshrl.u32 %v439, 7
      %v441 = vsub.s32 6, %v440
      %v442 = vrot.slane %v299, %v441
      %v443 = vlaneseq
      %v444 = vshrl.u32 %v443, 7
      %v445 = vsub.s32 6, %v444
      %v446 = vrot.slane %v300, %v445
      %v447 = vmul.f32 %v437, %v442
      %v448 = vmul.f32 %v438, %v446
      %449 = vst [vmem:[#allocation2 + $0x60] sm:$0xff] %v447
      %450 = vst [vmem:[#allocation2 + $0x68] sm:$0xff] %v448
      %451 = vrot.lane.b32.xlu0 %v321, 112
      %v452 = vpop.permute.xlu0 %451
      %453 = vrot.lane.b32.xlu0 %v322, 112
      %v454 = vpop.permute.xlu0 %453
      %vm455 = vcmp.lt.s32.totalorder %v328, 112
      %v456 = vsel %vm455, %v452, %v454
      %v457 = vsel %vm455, %v454, %v452
      %v458 = vlaneseq
      %v459 = vshrl.u32 %v458, 7
      %v460 = vsub.s32 7, %v459
      %v461 = vrot.slane %v299, %v460
      %v462 = vlaneseq
      %v463 = vshrl.u32 %v462, 7
      %v464 = vsub.s32 7, %v463
      %v465 = vrot.slane %v300, %v464
      %v466 = vmul.f32 %v456, %v461
      %v467 = vmul.f32 %v457, %v465
      %468 = vst [vmem:[#allocation2 + $0x70] sm:$0xff] %v466
      %469 = vst [vmem:[#allocation2 + $0x78] sm:$0xff] %v467
      %470 = vrot.lane.b32.xlu0 %v321, 111
      %v471 = vpop.permute.xlu0 %470
      %472 = vrot.lane.b32.xlu0 %v322, 111
      %v473 = vpop.permute.xlu0 %472
      %vm474 = vcmp.lt.s32.totalorder %v328, 111
      %v475 = vsel %vm474, %v471, %v473
      %v476 = vsel %vm474, %v473, %v471
      %v477 = vlaneseq
      %v478 = vshrl.u32 %v477, 7
      %v479 = vsub.s32 0, %v478
      %v480 = vrot.slane %v301, %v479
      %v481 = vlaneseq
      %v482 = vshrl.u32 %v481, 7
      %v483 = vsub.s32 0, %v482
      %v484 = vrot.slane %v302, %v483
      %v485 = vmul.f32 %v475, %v480
      %v486 = vmul.f32 %v476, %v484
      %487 = vst [vmem:[#allocation2 + $0x80] sm:$0xff] %v485
      %488 = vst [vmem:[#allocation2 + $0x88] sm:$0xff] %v486
      %v489 = vld [vmem:[%s293] sm:$0xff]
      %v491 = vcombine.high %v489, %v489
      %493 = vrot.lane.b32.xlu0 %v489, 17
      %v494 = vpop.permute.xlu0 %493
      %495 = vrot.lane.b32.xlu0 %v491, 17
      %v496 = vpop.permute.xlu0 %495
      %v497 = vsel %vm329, %v494, %v496
      %v498 = vsel %vm329, %v496, %v494
      %v499 = vmul.f32 %v498, %v335
      %v500 = vmul.f32 %v497, %v339
      %501 = vst [vmem:[#allocation2 + $0x90] sm:$0xf] %v499
      %502 = vst [vmem:[#allocation2 + $0x98] sm:$0xf] %v500
      %503 = vrot.lane.b32.xlu0 %v489, 16
      %v504 = vpop.permute.xlu0 %503
      %505 = vrot.lane.b32.xlu0 %v491, 16
      %v506 = vpop.permute.xlu0 %505
      %v507 = vsel %vm348, %v504, %v506
      %v508 = vsel %vm348, %v506, %v504
      %v509 = vmul.f32 %v508, %v354
      %v510 = vmul.f32 %v507, %v358
      %v513 = vrot.slane %v509, 4
      %v514 = vrot.slane %v510, 4
      %517 = vst [vmem:[#allocation2 + $0x90] sm:$0xf0] %v513
      %518 = vst [vmem:[#allocation2 + $0x98] sm:$0xf0] %v514
      %519 = vrot.lane.b32.xlu0 %v489, 15
      %v520 = vpop.permute.xlu0 %519
      %521 = vrot.lane.b32.xlu0 %v491, 15
      %v522 = vpop.permute.xlu0 %521
      %v523 = vsel %vm367, %v520, %v522
      %v524 = vsel %vm367, %v522, %v520
      %v525 = vmul.f32 %v524, %v373
      %v526 = vmul.f32 %v523, %v377
      %527 = vst [vmem:[#allocation2 + $0xa0] sm:$0xf] %v525
      %528 = vst [vmem:[#allocation2 + $0xa8] sm:$0xf] %v526
      %529 = vrot.lane.b32.xlu0 %v489, 1
      %v530 = vpop.permute.xlu0 %529
      %531 = vrot.lane.b32.xlu0 %v491, 1
      %v532 = vpop.permute.xlu0 %531
      %v533 = vsel %vm386, %v530, %v532
      %v534 = vsel %vm386, %v532, %v530
      %v535 = vmul.f32 %v534, %v392
      %v536 = vmul.f32 %v533, %v396
      %v539 = vrot.slane %v535, 4
      %v540 = vrot.slane %v536, 4
      %543 = vst [vmem:[#allocation2 + $0xa0] sm:$0xf0] %v539
      %544 = vst [vmem:[#allocation2 + $0xa8] sm:$0xf0] %v540
      %v547 = vcombine.low %v404, %v408
      %v549 = vmul.f32 %v489, %v547
      %v551 = vcombine.high %v549, %v549
      %553 = vst [vmem:[#allocation2 + $0xb0] sm:$0xf] %v549
      %554 = vst [vmem:[#allocation2 + $0xb8] sm:$0xf] %v551
      %555 = vrot.lane.b32.xlu0 %v489, 127
      %v556 = vpop.permute.xlu0 %555
      %557 = vrot.lane.b32.xlu0 %v491, 127
      %v558 = vpop.permute.xlu0 %557
      %v559 = vsel %vm417, %v556, %v558
      %v560 = vsel %vm417, %v558, %v556
      %v561 = vmul.f32 %v559, %v423
      %v562 = vmul.f32 %v560, %v427
      %v565 = vrot.slane %v561, 4
      %v566 = vrot.slane %v562, 4
      %569 = vst [vmem:[#allocation2 + $0xb0] sm:$0xf0] %v565
      %570 = vst [vmem:[#allocation2 + $0xb8] sm:$0xf0] %v566
      %571 = vrot.lane.b32.xlu0 %v489, 113
      %v572 = vpop.permute.xlu0 %571
      %573 = vrot.lane.b32.xlu0 %v491, 113
      %v574 = vpop.permute.xlu0 %573
      %v575 = vsel %vm436, %v572, %v574
      %v576 = vsel %vm436, %v574, %v572
      %v577 = vmul.f32 %v575, %v442
      %v578 = vmul.f32 %v576, %v446
      %579 = vst [vmem:[#allocation2 + $0xc0] sm:$0xf] %v577
      %580 = vst [vmem:[#allocation2 + $0xc8] sm:$0xf] %v578
      %581 = vrot.lane.b32.xlu0 %v489, 112
      %v582 = vpop.permute.xlu0 %581
      %583 = vrot.lane.b32.xlu0 %v491, 112
      %v584 = vpop.permute.xlu0 %583
      %v585 = vsel %vm455, %v582, %v584
      %v586 = vsel %vm455, %v584, %v582
      %v587 = vmul.f32 %v585, %v461
      %v588 = vmul.f32 %v586, %v465
      %v591 = vrot.slane %v587, 4
      %v592 = vrot.slane %v588, 4
      %595 = vst [vmem:[#allocation2 + $0xc0] sm:$0xf0] %v591
      %596 = vst [vmem:[#allocation2 + $0xc8] sm:$0xf0] %v592
      %597 = vrot.lane.b32.xlu0 %v489, 111
      %v598 = vpop.permute.xlu0 %597
      %599 = vrot.lane.b32.xlu0 %v491, 111
      %v600 = vpop.permute.xlu0 %599
      %v601 = vsel %vm474, %v598, %v600
      %v602 = vsel %vm474, %v600, %v598
      %v603 = vmul.f32 %v601, %v480
      %v604 = vmul.f32 %v602, %v484
      %605 = vst [vmem:[#allocation2 + $0xd0] sm:$0xf] %v603
      %606 = vst [vmem:[#allocation2 + $0xd8] sm:$0xf] %v604
      %v607 = vld [vmem:[%s4] sm:$0xff]
      %v608 = vld [vmem:[#allocation2] sm:$0xff]
      %v609 = vld [vmem:[#allocation2 + $0x8] sm:$0xff]
      %v610 = vld [vmem:[#allocation2 + $0x10] sm:$0xff]
      %v611 = vld [vmem:[#allocation2 + $0x18] sm:$0xff]
      %v612 = vld [vmem:[#allocation2 + $0x20] sm:$0xff]
      %v613 = vld [vmem:[#allocation2 + $0x28] sm:$0xff]
      %v614 = vld [vmem:[#allocation2 + $0x30] sm:$0xff]
      %v615 = vld [vmem:[#allocation2 + $0x38] sm:$0xff]
      %v616 = vld [vmem:[#allocation2 + $0x40] sm:$0xff]
      %v617 = vld [vmem:[#allocation2 + $0x48] sm:$0xff]
      %v618 = vld [vmem:[#allocation2 + $0x50] sm:$0xff]
      %v619 = vld [vmem:[#allocation2 + $0x58] sm:$0xff]
      %v620 = vld [vmem:[#allocation2 + $0x60] sm:$0xff]
      %v621 = vld [vmem:[#allocation2 + $0x68] sm:$0xff]
      %v622 = vld [vmem:[#allocation2 + $0x70] sm:$0xff]
      %v623 = vld [vmem:[#allocation2 + $0x78] sm:$0xff]
      %v624 = vld [vmem:[#allocation2 + $0x80] sm:$0xff]
      %v625 = vld [vmem:[#allocation2 + $0x88] sm:$0xff]
      %v626 = vld [vmem:[#allocation2 + $0x90] sm:$0xff]
      %v627 = vld [vmem:[#allocation2 + $0x98] sm:$0xff]
      %v628 = vld [vmem:[#allocation2 + $0xa0] sm:$0xff]
      %v629 = vld [vmem:[#allocation2 + $0xa8] sm:$0xff]
      %v630 = vld [vmem:[#allocation2 + $0xb0] sm:$0xff]
      %v631 = vld [vmem:[#allocation2 + $0xb8] sm:$0xff]
      %v632 = vld [vmem:[#allocation2 + $0xc0] sm:$0xff]
      %v633 = vld [vmem:[#allocation2 + $0xc8] sm:$0xff]
      %v634 = vld [vmem:[#allocation2 + $0xd0] sm:$0xf]
      %v635 = vld [vmem:[#allocation2 + $0xd8] sm:$0xf]
      %v636 = vld [vmem:[%s5] sm:$0xff]
      %638 = vset.pattern.permute.xlu0 0
      %639 = vperm.xlu0 %638, %v636
      %v640 = vpop.permute.xlu0 %639
      %vm642 = vcmask 883712
      %v644 = vsel %vm642, %v607, 0
      %vm646 = vcmask 1043456
      %v648 = vsel %vm646, %v634, 0
      %v651 = vsel %vm646, %v635, 0
      %653 = vmatprep.subr.mxu0 0.0
      %654 = vmatpush1.msra.mxu0 0.0
      %655 = vmatprep.subr.mxu0 0.0
      %656 = vmatpush1.msra.mxu0 0.0
      %657 = vmatprep.subr.mxu0 %v651
      %658 = vmatpush1.msra.mxu0 %v648
      %659 = vmatprep.subr.mxu0 %v633
      %660 = vmatpush1.msra.mxu0 %v632
      %661 = vmatprep.subr.mxu0 %v631
      %662 = vmatpush1.msra.mxu0 %v630
      %663 = vmatprep.subr.mxu0 %v629
      %664 = vmatpush1.msra.mxu0 %v628
      %665 = vmatprep.subr.mxu0 %v627
      %666 = vmatpush1.msra.mxu0 %v626
      %667 = vmatprep.subr.mxu0 %v625
      %668 = vmatpush1.msra.mxu0 %v624
      %669 = vmatprep.subr.mxu0 %v623
      %670 = vmatpush1.msra.mxu0 %v622
      %671 = vmatprep.subr.mxu0 %v621
      %672 = vmatpush1.msra.mxu0 %v620
      %673 = vmatprep.subr.mxu0 %v619
      %674 = vmatpush1.msra.mxu0 %v618
      %675 = vmatprep.subr.mxu0 %v617
      %676 = vmatpush1.msra.mxu0 %v616
      %677 = vmatprep.subr.mxu0 %v615
      %678 = vmatpush1.msra.mxu0 %v614
      %679 = vmatprep.subr.mxu0 %v613
      %680 = vmatpush1.msra.mxu0 %v612
      %681 = vmatprep.subr.mxu0 %v611
      %682 = vmatpush1.msra.mxu0 %v610
      %683 = vmatprep.subr.mxu0 %v609
      %684 = vmatpush1.msra.mxu0 %v608
      %685 = vmatprep.subr.mxu0 0.0
      %686 = vmatpush2.msra.mxu0 0.0
      %687 = vmatprep.subr.mxu0 0.0
      %688 = vmatpush2.msra.mxu0 0.0
      %689 = vmatprep.subr.mxu0 0.0
      %690 = vmatpush2.msra.mxu0 0.0
      %691 = vmatprep.subr.mxu0 0.0
      %692 = vmatpush2.msra.mxu0 0.0
      %693 = vmatprep.subr.mxu0 0.0
      %694 = vmatpush2.msra.mxu0 0.0
      %695 = vmatprep.subr.mxu0 0.0
      %696 = vmatpush2.msra.mxu0 0.0
      %697 = vmatprep.subr.mxu0 0.0
      %698 = vmatpush2.msra.mxu0 0.0
      %699 = vmatprep.subr.mxu0 0.0
      %700 = vmatpush2.msra.mxu0 0.0
      %701 = vmatprep.subr.mxu0 0.0
      %702 = vmatpush2.msra.mxu0 0.0
      %703 = vmatprep.subr.mxu0 0.0
      %704 = vmatpush2.msra.mxu0 0.0
      %705 = vmatprep.subr.mxu0 0.0
      %706 = vmatpush2.msra.mxu0 0.0
      %707 = vmatprep.subr.mxu0 0.0
      %708 = vmatpush2.msra.mxu0 0.0
      %709 = vmatprep.subr.mxu0 0.0
      %710 = vmatpush2.msra.mxu0 0.0
      %711 = vmatprep.subr.mxu0 0.0
      %712 = vmatpush2.msra.mxu0 0.0
      %713 = vmatprep.subr.mxu0 0.0
      %714 = vmatpush2.msra.mxu0 0.0
      %715 = vmatprep.subr.mxu0 0.0
      %716 = vmatpush2.msra.mxu0 0.0
      %717 = vmatprep.mubr.f32.mxu0 0.0
      %718 = vmatmul.mubr.f32.gmra.mxu0 %v644
      %v719 = vpop.f32.mrf.mxu0
      %v720 = vadd.f32 %v640, %v719
      %v721 = vpop.f32.mrf.mxu0
      %v722 = vadd.f32 %v640, %v721
      %723 = vdwg.mxu0
      %724 = vst [vmem:[%s298] sm:$0xff] %v720
      %725 = vst [vmem:[%s298 + $0x8] sm:$0xff] %v722
      %p726 = scmp.lt.s32.totalorder %s18, 1
      %s727 = scalar_select %p726, %s18, 1
      %s728 = smul.addr %s727, 2
      %s729 = smul.addr %s728, 8
      %s730 = scalar_lea.vmem %s7, %s729
      // Predicated region
      $region49: #{residual_block_forward.3} parent=47 // pred_check
        %p731 = pneg %p193
      $region50: #{residual_block_forward.3} parent=47 // pred_check_branch
        %733 = sbr.rel (%p731) target = $region52
      $region51: #{residual_block_forward.3} parent=47 // pred_region
        _
      $region52: #{residual_block_forward.3} parent=47 // pred_fallthru
        _
    $region48: #{residual_block_forward.3} parent=5 // pred_fallthru
      _
    %p734 = scmp.le.s32.totalorder 2, %s13
    // Predicated region
    $region53: #{residual_block_forward.3} parent=5 // pred_check
      %p735 = pneg %p734
    $region54: #{residual_block_forward.3} parent=5 // pred_check_branch
      %737 = sbr.rel (%p735) target = $region56
    $region55: #{residual_block_forward.3} parent=5 // pred_region
      %s738 = ssub.s32 %s13, 2
      // Predicated region
      $region57: #{residual_block_forward.3} parent=55 // pred_check
        %p739 = pneg %p199
      $region58: #{residual_block_forward.3} parent=55 // pred_check_branch
        %741 = sbr.rel (%p739) target = $region60
      $region59: #{residual_block_forward.3} parent=55 // pred_region
        %p742 = scmp.lt.s32.totalorder %s19, 1
        %s743 = scalar_select %p742, %s19, 1
        %s744 = smul.addr %s743, 2
        %s745 = smul.addr %s744, 8
        %s746 = scalar_lea.vmem %s7, %s745
      $region60: #{residual_block_forward.3} parent=55 // pred_fallthru
        _
    $region56: #{residual_block_forward.3} parent=5 // pred_fallthru
      _
  $region6: #{residual_block_forward.3} parent=0 // loop_footer
    %s17 = sadd.s32 1, %s13
  $region7: #{residual_block_forward.3} parent=0 // loop_footer_branch
    %12 = sbr.rel target = $region3
  $region8: #{residual_block_forward.3} parent=0 // loop_exit
    _

</llo_original>
